<compile_context>
chip_gen: v5e
topology: v5e:2x2
jax: 0.10.0
libtpu: 0.0.40
codegen_flags: <defaults>
</compile_context>

<pallas_src>
import functools

import jax
import jax.numpy as jnp
from jax import lax
from jax.experimental import pallas as pl
from jax.experimental.pallas import tpu as pltpu


def _cpe_kernel(x_ref, xlo_ref, xhi_ref, w_ref, b_ref, o_ref, *,
                tt, H, C, WC, compute_in_f32):
    # x_ref  : (1, tt, H, WC)   current T tile, lane axis = W*C
    # xlo_ref: (1, 1,  H, WC)   T row just below the tile (clamped index_map)
    # xhi_ref: (1, 1,  H, WC)   T row just above the tile (clamped index_map)
    # w_ref  : (27, H, WC)      per-tap weights tiled over W, with the W- and
    #                           H-boundary zeros baked in
    # b_ref  : (1, WC)          bias tiled over W (f32)
    # o_ref  : (1, tt, H, WC)
    ti = pl.program_id(1)
    n_t = pl.num_programs(1)

    x = x_ref[0]                                      # (tt, H, WC)
    zero = jnp.zeros((), x.dtype)

    # Zero the T-halo rows at the global sequence edges (NaN-safe select).
    xlo = jnp.where(ti > 0, xlo_ref[0], zero)         # (1, H, WC)
    xhi = jnp.where(ti < n_t - 1, xhi_ref[0], zero)   # (1, H, WC)
    xfull = jnp.concatenate([xlo, x, xhi], axis=0)    # (tt + 2, H, WC)

    if compute_in_f32:
        # v5e bf16 path: one upfront convert instead of 26 per-tap converts.
        xfull = xfull.astype(jnp.float32)

    bias = b_ref[...].astype(jnp.float32)             # (1, WC) -> bcast (tt,H,WC)

    def h_shift(v, b):
        # output row h reads input row h + b  ->  roll so xb[h] = v[h + b].
        if b == 0:
            return v
        shift = (1 if b == -1 else H - 1) % max(H, 1)
        if shift == 0:
            return v
        return pltpu.roll(v, shift=shift, axis=1)     # sublane roll (XLU)

    def w_shift(v, d):
        # output lane j reads input lane j + d*C  ->  roll so xr[j] = v[j + d*C].
        if d == 0:
            return v
        shift = (C if d == -1 else WC - C) % WC
        if shift == 0:
            return v
        return pltpu.roll(v, shift=shift, axis=2)     # lane roll (XLU)

    # One f32 partial accumulator per kh; each rolled view is consumed
    # immediately by its 3 kt taps (kt = major-axis slice, free).
    parts = []
    for b in (-1, 0, 1):             # kh offset (H axis)
        xb = h_shift(xfull, b)
        part = None
        for d in (-1, 0, 1):         # kw offset (W axis)
            xr = w_shift(xb, d)
            for a in (-1, 0, 1):     # kt offset (T axis)
                k = (a + 1) * 9 + (b + 1) * 3 + (d + 1)
                xa = xr[1 + a: 1 + a + tt]            # (tt, H, WC)
                term = (xa * w_ref[k]).astype(jnp.float32)
                part = term if part is None else part + term
        parts.append(part)

    acc = bias + parts[0] + parts[1] + parts[2]       # (tt, H, WC) f32
    o_ref[0] = acc.astype(o_ref.dtype)


def _per_step_vmem_bytes(tt, H, WC, in_itemsize, compute_itemsize):
    """Rough per-grid-step VMEM footprint (pipeline buffers + temporaries)."""
    blk = tt * H * WC
    row = H * WC
    total = 0
    total += 2 * blk * in_itemsize            # in block, double-buffered
    total += 2 * 2 * row * in_itemsize        # two 1-row T halos, double-buffered
    total += 2 * blk * in_itemsize            # out block, double-buffered
    total += 2 * 27 * row * compute_itemsize  # weights (conservative x2)
    total += 2 * WC * 4                       # bias
    total += 3 * (tt + 2) * row * compute_itemsize  # xfull + ~2 live rolled views
    total += 4 * blk * 4                      # f32 partial accumulators + slack
    return total


def _choose_t_tile(T, H, WC, in_itemsize, compute_itemsize, batch, *,
                   budget_bytes, min_units):
    """Largest divisor of T whose per-step footprint fits the budget; keep at
    least `min_units` grid units (only >1 on v7x, which has 2 TensorCores)."""
    divisors = [d for d in range(1, T + 1) if T % d == 0]
    fitting = [d for d in divisors
               if _per_step_vmem_bytes(d, H, WC, in_itemsize,
                                       compute_itemsize) <= budget_bytes]
    if not fitting:
        fitting = [1]
    tt = max(fitting)
    if batch * (T // tt) < min_units:
        better = [d for d in fitting if batch * (T // d) >= min_units]
        if better:
            tt = max(better)
    return tt


def _device_kind():
    try:
        return jax.devices()[0].device_kind.lower()
    except Exception:  # pragma: no cover
        return ""


def conv_position_encoding(x, weight, bias, *, t_tile=None,
                           vmem_limit_bytes=None, compute_in_f32=None):
    """Depthwise 3x3x3 conv, padding 1 over (T, H, W), channels-last.

    x:      (B, T, H, W, C)
    weight: (C, 1, 3, 3, 3)   PyTorch nn.Conv3d(groups=C) weight layout
    bias:   (C,)
    returns (B, T, H, W, C)
    """
    B, T, H, W, C = x.shape
    WC = W * C

    # The whole lane-dense design relies on this; without it stores silently
    # become masked vst.msk and the W-fold lane-shift trick breaks.
    if WC % 128 != 0:
        # TODO(synk): pad W*C up to a multiple of 128 instead of refusing.
        raise ValueError(f"W*C={WC} must be a multiple of 128 for the "
                         "lane-dense ConvPositionEncoding kernel")

    kind = _device_kind()
    is_v7 = any(t in kind for t in ("v7", "7x", "tpu7"))
    is_v6 = "v6" in kind
    is_v5e = ("v5e" in kind) or ("v5 lite" in kind) or ("v5lite" in kind)

    if vmem_limit_bytes is None:
        # v6e has 128 MiB physical VMEM (32 MiB scoped default); v7x only has
        # 64 MiB physical, so stay at 32 MiB there. v5e: 128 MiB physical but
        # a 16 MiB scoped default, so raise it explicitly.
        vmem_limit_bytes = (64 * 1024 * 1024) if is_v6 else (32 * 1024 * 1024)

    if compute_in_f32 is None:
        # v5e's VPU has no bf16 ALUs: convert once per view instead of per tap.
        compute_in_f32 = bool(is_v5e and x.dtype == jnp.bfloat16)

    compute_dtype = jnp.float32 if compute_in_f32 else x.dtype
    in_itemsize = jnp.dtype(x.dtype).itemsize
    compute_itemsize = jnp.dtype(compute_dtype).itemsize

    # Fold (W, C) onto the lane axis (free, contiguous reshape).
    x2 = x.reshape(B, T, H, WC)

    # Per-tap weights: (C,1,3,3,3) -> (3,3,3,C) -> tiled over W -> (27,H,W*C),
    # with the W- and H-boundary zeros baked in so the in-kernel rolls need no
    # data-side masking (assumes finite inputs: 0-weight x wrapped-lane data).
    w = jnp.transpose(weight[:, 0], (1, 2, 3, 0))        # (3,3,3,C) [kt,kh,kw,c]
    w_t = jnp.tile(w, (1, 1, 1, W))                      # (3,3,3,W*C), j = w*C+c
    wmask = jnp.ones((3, WC), dtype=w_t.dtype)
    wmask = wmask.at[0, :C].set(0.0)                     # kw=0 (w-1): w==0 invalid
    wmask = wmask.at[2, (W - 1) * C:].set(0.0)           # kw=2 (w+1): w==W-1 invalid
    w_t = w_t * wmask[None, None, :, :]
    hmask = jnp.ones((3, H), dtype=w_t.dtype)
    hmask = hmask.at[0, 0].set(0.0)                      # kh=0 (h-1): h==0 invalid
    hmask = hmask.at[2, H - 1].set(0.0)                  # kh=2 (h+1): h==H-1 invalid
    w_full = w_t[:, :, :, None, :] * hmask[None, :, None, :, None]  # (3,3,3,H,WC)
    w_flat = w_full.reshape(27, H, WC).astype(compute_dtype)

    b_flat = jnp.tile(bias, W).reshape(1, WC).astype(jnp.float32)

    budget = min(16 * 1024 * 1024, vmem_limit_bytes // 2)
    min_units = 2 if is_v7 else 1
    tt = t_tile if t_tile is not None else _choose_t_tile(
        T, H, WC, in_itemsize, compute_itemsize, B,
        budget_bytes=budget, min_units=min_units)
    assert T % tt == 0, "t_tile must divide T"
    n_t = T // tt

    kernel = functools.partial(_cpe_kernel, tt=tt, H=H, C=C, WC=WC,
                               compute_in_f32=compute_in_f32)

    n_elems = B * T * H * WC
    cost = pl.CostEstimate(
        flops=2 * 27 * n_elems,
        transcendentals=0,
        bytes_accessed=2 * n_elems * in_itemsize
        + 27 * H * WC * compute_itemsize + WC * 4,
    )

    out2 = pl.pallas_call(
        kernel,
        out_shape=jax.ShapeDtypeStruct((B, T, H, WC), x.dtype),
        grid_spec=pltpu.PrefetchScalarGridSpec(
            num_scalar_prefetch=0,
            grid=(B, n_t),
            in_specs=[
                # Current T tile.
                pl.BlockSpec((1, tt, H, WC), lambda b, i: (b, i, 0, 0)),
                # Single-row T halos (block size 1 along T => block index is
                # the element row), clamped at the global edges and
                # zero-selected inside the kernel.
                pl.BlockSpec((1, 1, H, WC),
                             lambda b, i: (b, jnp.maximum(i * tt - 1, 0), 0, 0)),
                pl.BlockSpec((1, 1, H, WC),
                             lambda b, i: (b, jnp.minimum(i * tt + tt, T - 1), 0, 0)),
                # Constant-index blocks: fetched once, resident across steps.
                pl.BlockSpec((27, H, WC), lambda b, i: (0, 0, 0)),
                pl.BlockSpec((1, WC), lambda b, i: (0, 0)),
            ],
            out_specs=pl.BlockSpec((1, tt, H, WC), lambda b, i: (b, i, 0, 0)),
        ),
        compiler_params=pltpu.CompilerParams(
            dimension_semantics=("parallel", "parallel"),
            vmem_limit_bytes=vmem_limit_bytes,
        ),
        cost_estimate=cost,
    )(x2, x2, x2, w_flat, b_flat)

    return out2.reshape(B, T, H, W, C)


def _reference(x, weight, bias):
    # Pure-JAX reference using XLA's grouped conv in NCDHW (mirrors PyTorch).
    B, T, H, W, C = x.shape
    x_ncdhw = jnp.transpose(x, (0, 4, 1, 2, 3))
    y = lax.conv_general_dilated(
        x_ncdhw.astype(jnp.float32),
        weight.astype(jnp.float32),
        window_strides=(1, 1, 1),
        padding=((1, 1), (1, 1), (1, 1)),
        dimension_numbers=("NCDHW", "OIDHW", "NCDHW"),
        feature_group_count=C,
    )
    y = y + bias.reshape(1, C, 1, 1, 1)
    return jnp.transpose(y, (0, 2, 3, 4, 1)).astype(x.dtype)


if __name__ == "__main__":
    key = jax.random.PRNGKey(0)
    k_x, k_w, k_b = jax.random.split(key, 3)

    B, T, H, W, C = 2, 8, 8, 8, 32  # dim = C = 32

    x = jax.random.normal(k_x, (B, T, H, W, C), dtype=jnp.float32)
    # Synthetic parameters matching nn.Conv3d(dim, dim, 3, padding=1, groups=dim):
    #   weight: (dim, 1, 3, 3, 3), bias: (dim,)
    weight = jax.random.normal(k_w, (C, 1, 3, 3, 3), dtype=jnp.float32) * 0.1
    bias = jax.random.normal(k_b, (C,), dtype=jnp.float32) * 0.1

    ref = jax.block_until_ready(_reference(x, weight, bias))

    # Default (auto-chosen) T tiling.
    out = jax.block_until_ready(conv_position_encoding(x, weight, bias))
    assert out.shape == (B, T, H, W, C)
    assert jnp.allclose(out, ref, atol=1e-4, rtol=1e-4), "mismatch (default tiling)"

    # Explicit multi-tile run exercising the cross-tile T-halo path.
    out_tiled = jax.block_until_ready(
        conv_position_encoding(x, weight, bias, t_tile=2))
    assert jnp.allclose(out_tiled, ref, atol=1e-4, rtol=1e-4), "mismatch (t_tile=2)"

    print("KERNEL_OK")
</pallas_src>

<mosaic_0001>
module attributes {stable_mosaic.version = 11 : i64} {
  func.func @_cpe_kernel(%arg0: i32, %arg1: i32, %arg2: memref<1x8x8x256xf32, #tpu.memory_space<vmem>>, %arg3: memref<1x1x8x256xf32, #tpu.memory_space<vmem>>, %arg4: memref<1x1x8x256xf32, #tpu.memory_space<vmem>>, %arg5: memref<27x8x256xf32, #tpu.memory_space<vmem>>, %arg6: memref<1x256xf32, #tpu.memory_space<vmem>>, %arg7: memref<1x8x8x256xf32, #tpu.memory_space<vmem>>) attributes {dimension_semantics = [#tpu.dimension_semantics<parallel>, #tpu.dimension_semantics<parallel>], iteration_bounds = array<i64: 2, 1>, scalar_prefetch = 0 : i64, scratch_operands = 0 : i64, tpu.core_type = #tpu.core_type<tc>, window_params = [{transform_indices = @transform_0, window_bounds = array<i64: 1, 8, 8, 256>}, {transform_indices = @transform_1, window_bounds = array<i64: 1, 1, 8, 256>}, {transform_indices = @transform_2, window_bounds = array<i64: 1, 1, 8, 256>}, {pipeline_mode = #tpu.pipeline_mode<synchronous>, transform_indices = @transform_3, window_bounds = array<i64: 27, 8, 256>}, {pipeline_mode = #tpu.pipeline_mode<synchronous>, transform_indices = @transform_4, window_bounds = array<i64: 1, 256>}, {transform_indices = @transform_5, window_bounds = array<i64: 1, 8, 8, 256>}]} {
    %c0 = arith.constant 0 : index
    %c0_0 = arith.constant 0 : index
    %c0_1 = arith.constant 0 : index
    %c0_2 = arith.constant 0 : index
    %0 = vector.load %arg2[%c0, %c0_0, %c0_1, %c0_2] : memref<1x8x8x256xf32, #tpu.memory_space<vmem>>, vector<1x8x8x256xf32>
    %1 = vector.shape_cast %0 : vector<1x8x8x256xf32> to vector<8x8x256xf32>
    %c0_i32 = arith.constant 0 : i32
    %2 = arith.cmpi sgt, %arg1, %c0_i32 : i32
    %c0_3 = arith.constant 0 : index
    %c0_4 = arith.constant 0 : index
    %c0_5 = arith.constant 0 : index
    %c0_6 = arith.constant 0 : index
    %3 = vector.load %arg3[%c0_3, %c0_4, %c0_5, %c0_6] : memref<1x1x8x256xf32, #tpu.memory_space<vmem>>, vector<1x1x8x256xf32>
    %4 = vector.shape_cast %3 : vector<1x1x8x256xf32> to vector<1x8x256xf32>
    %cst = arith.constant 0.000000e+00 : f32
    %5 = vector.broadcast %cst : f32 to vector<1x8x256xf32>
    %6 = arith.select %2, %4, %5 : vector<1x8x256xf32>
    %c0_i32_7 = arith.constant 0 : i32
    %7 = arith.cmpi slt, %arg1, %c0_i32_7 : i32
    %c0_8 = arith.constant 0 : index
    %c0_9 = arith.constant 0 : index
    %c0_10 = arith.constant 0 : index
    %c0_11 = arith.constant 0 : index
    %8 = vector.load %arg4[%c0_8, %c0_9, %c0_10, %c0_11] : memref<1x1x8x256xf32, #tpu.memory_space<vmem>>, vector<1x1x8x256xf32>
    %9 = vector.shape_cast %8 : vector<1x1x8x256xf32> to vector<1x8x256xf32>
    %cst_12 = arith.constant 0.000000e+00 : f32
    %10 = vector.broadcast %cst_12 : f32 to vector<1x8x256xf32>
    %11 = arith.select %7, %9, %10 : vector<1x8x256xf32>
    %12 = tpu.concatenate %6, %1, %11 in 0 : vector<1x8x256xf32>, vector<8x8x256xf32>, vector<1x8x256xf32> -> vector<10x8x256xf32>
    %c0_13 = arith.constant 0 : index
    %c0_14 = arith.constant 0 : index
    %13 = vector.load %arg6[%c0_13, %c0_14] : memref<1x256xf32, #tpu.memory_space<vmem>>, vector<1x256xf32>
    %c1_i32 = arith.constant 1 : i32
    %14 = tpu.dynamic_rotate %12 by %c1_i32 dim 1 : vector<10x8x256xf32>, i32 -> vector<10x8x256xf32>
    %c32_i32 = arith.constant 32 : i32
    %15 = tpu.dynamic_rotate %14 by %c32_i32 dim 2 : vector<10x8x256xf32>, i32 -> vector<10x8x256xf32>
    %16 = vector.extract_strided_slice %15 {offsets = [0, 0, 0], sizes = [8, 8, 256], strides = [1, 1, 1]} : vector<10x8x256xf32> to vector<8x8x256xf32>
    %c0_15 = arith.constant 0 : index
    %c0_16 = arith.constant 0 : index
    %c0_17 = arith.constant 0 : index
    %17 = vector.load %arg5[%c0_15, %c0_16, %c0_17] : memref<27x8x256xf32, #tpu.memory_space<vmem>>, vector<1x8x256xf32>
    %18 = vector.shape_cast %17 : vector<1x8x256xf32> to vector<8x256xf32>
    %19 = vector.shape_cast %18 : vector<8x256xf32> to vector<1x8x256xf32>
    %20 = vector.broadcast %19 : vector<1x8x256xf32> to vector<8x8x256xf32>
    %21 = arith.mulf %16, %20 : vector<8x8x256xf32>
    %22 = vector.extract_strided_slice %15 {offsets = [1, 0, 0], sizes = [8, 8, 256], strides = [1, 1, 1]} : vector<10x8x256xf32> to vector<8x8x256xf32>
    %c9 = arith.constant 9 : index
    %c0_18 = arith.constant 0 : index
    %c0_19 = arith.constant 0 : index
    %23 = vector.load %arg5[%c9, %c0_18, %c0_19] : memref<27x8x256xf32, #tpu.memory_space<vmem>>, vector<1x8x256xf32>
    %24 = vector.shape_cast %23 : vector<1x8x256xf32> to vector<8x256xf32>
    %25 = vector.shape_cast %24 : vector<8x256xf32> to vector<1x8x256xf32>
    %26 = vector.broadcast %25 : vector<1x8x256xf32> to vector<8x8x256xf32>
    %27 = arith.mulf %22, %26 : vector<8x8x256xf32>
    %28 = arith.addf %21, %27 : vector<8x8x256xf32>
    %29 = vector.extract_strided_slice %15 {offsets = [2, 0, 0], sizes = [8, 8, 256], strides = [1, 1, 1]} : vector<10x8x256xf32> to vector<8x8x256xf32>
    %c18 = arith.constant 18 : index
    %c0_20 = arith.constant 0 : index
    %c0_21 = arith.constant 0 : index
    %30 = vector.load %arg5[%c18, %c0_20, %c0_21] : memref<27x8x256xf32, #tpu.memory_space<vmem>>, vector<1x8x256xf32>
    %31 = vector.shape_cast %30 : vector<1x8x256xf32> to vector<8x256xf32>
    %32 = vector.shape_cast %31 : vector<8x256xf32> to vector<1x8x256xf32>
    %33 = vector.broadcast %32 : vector<1x8x256xf32> to vector<8x8x256xf32>
    %34 = arith.mulf %29, %33 : vector<8x8x256xf32>
    %35 = arith.addf %28, %34 : vector<8x8x256xf32>
    %36 = vector.extract_strided_slice %14 {offsets = [0, 0, 0], sizes = [8, 8, 256], strides = [1, 1, 1]} : vector<10x8x256xf32> to vector<8x8x256xf32>
    %c1 = arith.constant 1 : index
    %c0_22 = arith.constant 0 : index
    %c0_23 = arith.constant 0 : index
    %37 = vector.load %arg5[%c1, %c0_22, %c0_23] : memref<27x8x256xf32, #tpu.memory_space<vmem>>, vector<1x8x256xf32>
    %38 = vector.shape_cast %37 : vector<1x8x256xf32> to vector<8x256xf32>
    %39 = vector.shape_cast %38 : vector<8x256xf32> to vector<1x8x256xf32>
    %40 = vector.broadcast %39 : vector<1x8x256xf32> to vector<8x8x256xf32>
    %41 = arith.mulf %36, %40 : vector<8x8x256xf32>
    %42 = arith.addf %35, %41 : vector<8x8x256xf32>
    %43 = vector.extract_strided_slice %14 {offsets = [1, 0, 0], sizes = [8, 8, 256], strides = [1, 1, 1]} : vector<10x8x256xf32> to vector<8x8x256xf32>
    %c10 = arith.constant 10 : index
    %c0_24 = arith.constant 0 : index
    %c0_25 = arith.constant 0 : index
    %44 = vector.load %arg5[%c10, %c0_24, %c0_25] : memref<27x8x256xf32, #tpu.memory_space<vmem>>, vector<1x8x256xf32>
    %45 = vector.shape_cast %44 : vector<1x8x256xf32> to vector<8x256xf32>
    %46 = vector.shape_cast %45 : vector<8x256xf32> to vector<1x8x256xf32>
    %47 = vector.broadcast %46 : vector<1x8x256xf32> to vector<8x8x256xf32>
    %48 = arith.mulf %43, %47 : vector<8x8x256xf32>
    %49 = arith.addf %42, %48 : vector<8x8x256xf32>
    %50 = vector.extract_strided_slice %14 {offsets = [2, 0, 0], sizes = [8, 8, 256], strides = [1, 1, 1]} : vector<10x8x256xf32> to vector<8x8x256xf32>
    %c19 = arith.constant 19 : index
    %c0_26 = arith.constant 0 : index
    %c0_27 = arith.constant 0 : index
    %51 = vector.load %arg5[%c19, %c0_26, %c0_27] : memref<27x8x256xf32, #tpu.memory_space<vmem>>, vector<1x8x256xf32>
    %52 = vector.shape_cast %51 : vector<1x8x256xf32> to vector<8x256xf32>
    %53 = vector.shape_cast %52 : vector<8x256xf32> to vector<1x8x256xf32>
    %54 = vector.broadcast %53 : vector<1x8x256xf32> to vector<8x8x256xf32>
    %55 = arith.mulf %50, %54 : vector<8x8x256xf32>
    %56 = arith.addf %49, %55 : vector<8x8x256xf32>
    %c224_i32 = arith.constant 224 : i32
    %57 = tpu.dynamic_rotate %14 by %c224_i32 dim 2 : vector<10x8x256xf32>, i32 -> vector<10x8x256xf32>
    %58 = vector.extract_strided_slice %57 {offsets = [0, 0, 0], sizes = [8, 8, 256], strides = [1, 1, 1]} : vector<10x8x256xf32> to vector<8x8x256xf32>
    %c2 = arith.constant 2 : index
    %c0_28 = arith.constant 0 : index
    %c0_29 = arith.constant 0 : index
    %59 = vector.load %arg5[%c2, %c0_28, %c0_29] : memref<27x8x256xf32, #tpu.memory_space<vmem>>, vector<1x8x256xf32>
    %60 = vector.shape_cast %59 : vector<1x8x256xf32> to vector<8x256xf32>
    %61 = vector.shape_cast %60 : vector<8x256xf32> to vector<1x8x256xf32>
    %62 = vector.broadcast %61 : vector<1x8x256xf32> to vector<8x8x256xf32>
    %63 = arith.mulf %58, %62 : vector<8x8x256xf32>
    %64 = arith.addf %56, %63 : vector<8x8x256xf32>
    %65 = vector.extract_strided_slice %57 {offsets = [1, 0, 0], sizes = [8, 8, 256], strides = [1, 1, 1]} : vector<10x8x256xf32> to vector<8x8x256xf32>
    %c11 = arith.constant 11 : index
    %c0_30 = arith.constant 0 : index
    %c0_31 = arith.constant 0 : index
    %66 = vector.load %arg5[%c11, %c0_30, %c0_31] : memref<27x8x256xf32, #tpu.memory_space<vmem>>, vector<1x8x256xf32>
    %67 = vector.shape_cast %66 : vector<1x8x256xf32> to vector<8x256xf32>
    %68 = vector.shape_cast %67 : vector<8x256xf32> to vector<1x8x256xf32>
    %69 = vector.broadcast %68 : vector<1x8x256xf32> to vector<8x8x256xf32>
    %70 = arith.mulf %65, %69 : vector<8x8x256xf32>
    %71 = arith.addf %64, %70 : vector<8x8x256xf32>
    %72 = vector.extract_strided_slice %57 {offsets = [2, 0, 0], sizes = [8, 8, 256], strides = [1, 1, 1]} : vector<10x8x256xf32> to vector<8x8x256xf32>
    %c20 = arith.constant 20 : index
    %c0_32 = arith.constant 0 : index
    %c0_33 = arith.constant 0 : index
    %73 = vector.load %arg5[%c20, %c0_32, %c0_33] : memref<27x8x256xf32, #tpu.memory_space<vmem>>, vector<1x8x256xf32>
    %74 = vector.shape_cast %73 : vector<1x8x256xf32> to vector<8x256xf32>
    %75 = vector.shape_cast %74 : vector<8x256xf32> to vector<1x8x256xf32>
    %76 = vector.broadcast %75 : vector<1x8x256xf32> to vector<8x8x256xf32>
    %77 = arith.mulf %72, %76 : vector<8x8x256xf32>
    %78 = arith.addf %71, %77 : vector<8x8x256xf32>
    %c32_i32_34 = arith.constant 32 : i32
    %79 = tpu.dynamic_rotate %12 by %c32_i32_34 dim 2 : vector<10x8x256xf32>, i32 -> vector<10x8x256xf32>
    %80 = vector.extract_strided_slice %79 {offsets = [0, 0, 0], sizes = [8, 8, 256], strides = [1, 1, 1]} : vector<10x8x256xf32> to vector<8x8x256xf32>
    %c3 = arith.constant 3 : index
    %c0_35 = arith.constant 0 : index
    %c0_36 = arith.constant 0 : index
    %81 = vector.load %arg5[%c3, %c0_35, %c0_36] : memref<27x8x256xf32, #tpu.memory_space<vmem>>, vector<1x8x256xf32>
    %82 = vector.shape_cast %81 : vector<1x8x256xf32> to vector<8x256xf32>
    %83 = vector.shape_cast %82 : vector<8x256xf32> to vector<1x8x256xf32>
    %84 = vector.broadcast %83 : vector<1x8x256xf32> to vector<8x8x256xf32>
    %85 = arith.mulf %80, %84 : vector<8x8x256xf32>
    %86 = vector.extract_strided_slice %79 {offsets = [1, 0, 0], sizes = [8, 8, 256], strides = [1, 1, 1]} : vector<10x8x256xf32> to vector<8x8x256xf32>
    %c12 = arith.constant 12 : index
    %c0_37 = arith.constant 0 : index
    %c0_38 = arith.constant 0 : index
    %87 = vector.load %arg5[%c12, %c0_37, %c0_38] : memref<27x8x256xf32, #tpu.memory_space<vmem>>, vector<1x8x256xf32>
    %88 = vector.shape_cast %87 : vector<1x8x256xf32> to vector<8x256xf32>
    %89 = vector.shape_cast %88 : vector<8x256xf32> to vector<1x8x256xf32>
    %90 = vector.broadcast %89 : vector<1x8x256xf32> to vector<8x8x256xf32>
    %91 = arith.mulf %86, %90 : vector<8x8x256xf32>
    %92 = arith.addf %85, %91 : vector<8x8x256xf32>
    %93 = vector.extract_strided_slice %79 {offsets = [2, 0, 0], sizes = [8, 8, 256], strides = [1, 1, 1]} : vector<10x8x256xf32> to vector<8x8x256xf32>
    %c21 = arith.constant 21 : index
    %c0_39 = arith.constant 0 : index
    %c0_40 = arith.constant 0 : index
    %94 = vector.load %arg5[%c21, %c0_39, %c0_40] : memref<27x8x256xf32, #tpu.memory_space<vmem>>, vector<1x8x256xf32>
    %95 = vector.shape_cast %94 : vector<1x8x256xf32> to vector<8x256xf32>
    %96 = vector.shape_cast %95 : vector<8x256xf32> to vector<1x8x256xf32>
    %97 = vector.broadcast %96 : vector<1x8x256xf32> to vector<8x8x256xf32>
    %98 = arith.mulf %93, %97 : vector<8x8x256xf32>
    %99 = arith.addf %92, %98 : vector<8x8x256xf32>
    %100 = vector.extract_strided_slice %12 {offsets = [0, 0, 0], sizes = [8, 8, 256], strides = [1, 1, 1]} : vector<10x8x256xf32> to vector<8x8x256xf32>
    %c4 = arith.constant 4 : index
    %c0_41 = arith.constant 0 : index
    %c0_42 = arith.constant 0 : index
    %101 = vector.load %arg5[%c4, %c0_41, %c0_42] : memref<27x8x256xf32, #tpu.memory_space<vmem>>, vector<1x8x256xf32>
    %102 = vector.shape_cast %101 : vector<1x8x256xf32> to vector<8x256xf32>
    %103 = vector.shape_cast %102 : vector<8x256xf32> to vector<1x8x256xf32>
    %104 = vector.broadcast %103 : vector<1x8x256xf32> to vector<8x8x256xf32>
    %105 = arith.mulf %100, %104 : vector<8x8x256xf32>
    %106 = arith.addf %99, %105 : vector<8x8x256xf32>
    %107 = vector.extract_strided_slice %12 {offsets = [1, 0, 0], sizes = [8, 8, 256], strides = [1, 1, 1]} : vector<10x8x256xf32> to vector<8x8x256xf32>
    %c13 = arith.constant 13 : index
    %c0_43 = arith.constant 0 : index
    %c0_44 = arith.constant 0 : index
    %108 = vector.load %arg5[%c13, %c0_43, %c0_44] : memref<27x8x256xf32, #tpu.memory_space<vmem>>, vector<1x8x256xf32>
    %109 = vector.shape_cast %108 : vector<1x8x256xf32> to vector<8x256xf32>
    %110 = vector.shape_cast %109 : vector<8x256xf32> to vector<1x8x256xf32>
    %111 = vector.broadcast %110 : vector<1x8x256xf32> to vector<8x8x256xf32>
    %112 = arith.mulf %107, %111 : vector<8x8x256xf32>
    %113 = arith.addf %106, %112 : vector<8x8x256xf32>
    %114 = vector.extract_strided_slice %12 {offsets = [2, 0, 0], sizes = [8, 8, 256], strides = [1, 1, 1]} : vector<10x8x256xf32> to vector<8x8x256xf32>
    %c22 = arith.constant 22 : index
    %c0_45 = arith.constant 0 : index
    %c0_46 = arith.constant 0 : index
    %115 = vector.load %arg5[%c22, %c0_45, %c0_46] : memref<27x8x256xf32, #tpu.memory_space<vmem>>, vector<1x8x256xf32>
    %116 = vector.shape_cast %115 : vector<1x8x256xf32> to vector<8x256xf32>
    %117 = vector.shape_cast %116 : vector<8x256xf32> to vector<1x8x256xf32>
    %118 = vector.broadcast %117 : vector<1x8x256xf32> to vector<8x8x256xf32>
    %119 = arith.mulf %114, %118 : vector<8x8x256xf32>
    %120 = arith.addf %113, %119 : vector<8x8x256xf32>
    %c224_i32_47 = arith.constant 224 : i32
    %121 = tpu.dynamic_rotate %12 by %c224_i32_47 dim 2 : vector<10x8x256xf32>, i32 -> vector<10x8x256xf32>
    %122 = vector.extract_strided_slice %121 {offsets = [0, 0, 0], sizes = [8, 8, 256], strides = [1, 1, 1]} : vector<10x8x256xf32> to vector<8x8x256xf32>
    %c5 = arith.constant 5 : index
    %c0_48 = arith.constant 0 : index
    %c0_49 = arith.constant 0 : index
    %123 = vector.load %arg5[%c5, %c0_48, %c0_49] : memref<27x8x256xf32, #tpu.memory_space<vmem>>, vector<1x8x256xf32>
    %124 = vector.shape_cast %123 : vector<1x8x256xf32> to vector<8x256xf32>
    %125 = vector.shape_cast %124 : vector<8x256xf32> to vector<1x8x256xf32>
    %126 = vector.broadcast %125 : vector<1x8x256xf32> to vector<8x8x256xf32>
    %127 = arith.mulf %122, %126 : vector<8x8x256xf32>
    %128 = arith.addf %120, %127 : vector<8x8x256xf32>
    %129 = vector.extract_strided_slice %121 {offsets = [1, 0, 0], sizes = [8, 8, 256], strides = [1, 1, 1]} : vector<10x8x256xf32> to vector<8x8x256xf32>
    %c14 = arith.constant 14 : index
    %c0_50 = arith.constant 0 : index
    %c0_51 = arith.constant 0 : index
    %130 = vector.load %arg5[%c14, %c0_50, %c0_51] : memref<27x8x256xf32, #tpu.memory_space<vmem>>, vector<1x8x256xf32>
    %131 = vector.shape_cast %130 : vector<1x8x256xf32> to vector<8x256xf32>
    %132 = vector.shape_cast %131 : vector<8x256xf32> to vector<1x8x256xf32>
    %133 = vector.broadcast %132 : vector<1x8x256xf32> to vector<8x8x256xf32>
    %134 = arith.mulf %129, %133 : vector<8x8x256xf32>
    %135 = arith.addf %128, %134 : vector<8x8x256xf32>
    %136 = vector.extract_strided_slice %121 {offsets = [2, 0, 0], sizes = [8, 8, 256], strides = [1, 1, 1]} : vector<10x8x256xf32> to vector<8x8x256xf32>
    %c23 = arith.constant 23 : index
    %c0_52 = arith.constant 0 : index
    %c0_53 = arith.constant 0 : index
    %137 = vector.load %arg5[%c23, %c0_52, %c0_53] : memref<27x8x256xf32, #tpu.memory_space<vmem>>, vector<1x8x256xf32>
    %138 = vector.shape_cast %137 : vector<1x8x256xf32> to vector<8x256xf32>
    %139 = vector.shape_cast %138 : vector<8x256xf32> to vector<1x8x256xf32>
    %140 = vector.broadcast %139 : vector<1x8x256xf32> to vector<8x8x256xf32>
    %141 = arith.mulf %136, %140 : vector<8x8x256xf32>
    %142 = arith.addf %135, %141 : vector<8x8x256xf32>
    %c7_i32 = arith.constant 7 : i32
    %143 = tpu.dynamic_rotate %12 by %c7_i32 dim 1 : vector<10x8x256xf32>, i32 -> vector<10x8x256xf32>
    %c32_i32_54 = arith.constant 32 : i32
    %144 = tpu.dynamic_rotate %143 by %c32_i32_54 dim 2 : vector<10x8x256xf32>, i32 -> vector<10x8x256xf32>
    %145 = vector.extract_strided_slice %144 {offsets = [0, 0, 0], sizes = [8, 8, 256], strides = [1, 1, 1]} : vector<10x8x256xf32> to vector<8x8x256xf32>
    %c6 = arith.constant 6 : index
    %c0_55 = arith.constant 0 : index
    %c0_56 = arith.constant 0 : index
    %146 = vector.load %arg5[%c6, %c0_55, %c0_56] : memref<27x8x256xf32, #tpu.memory_space<vmem>>, vector<1x8x256xf32>
    %147 = vector.shape_cast %146 : vector<1x8x256xf32> to vector<8x256xf32>
    %148 = vector.shape_cast %147 : vector<8x256xf32> to vector<1x8x256xf32>
    %149 = vector.broadcast %148 : vector<1x8x256xf32> to vector<8x8x256xf32>
    %150 = arith.mulf %145, %149 : vector<8x8x256xf32>
    %151 = vector.extract_strided_slice %144 {offsets = [1, 0, 0], sizes = [8, 8, 256], strides = [1, 1, 1]} : vector<10x8x256xf32> to vector<8x8x256xf32>
    %c15 = arith.constant 15 : index
    %c0_57 = arith.constant 0 : index
    %c0_58 = arith.constant 0 : index
    %152 = vector.load %arg5[%c15, %c0_57, %c0_58] : memref<27x8x256xf32, #tpu.memory_space<vmem>>, vector<1x8x256xf32>
    %153 = vector.shape_cast %152 : vector<1x8x256xf32> to vector<8x256xf32>
    %154 = vector.shape_cast %153 : vector<8x256xf32> to vector<1x8x256xf32>
    %155 = vector.broadcast %154 : vector<1x8x256xf32> to vector<8x8x256xf32>
    %156 = arith.mulf %151, %155 : vector<8x8x256xf32>
    %157 = arith.addf %150, %156 : vector<8x8x256xf32>
    %158 = vector.extract_strided_slice %144 {offsets = [2, 0, 0], sizes = [8, 8, 256], strides = [1, 1, 1]} : vector<10x8x256xf32> to vector<8x8x256xf32>
    %c24 = arith.constant 24 : index
    %c0_59 = arith.constant 0 : index
    %c0_60 = arith.constant 0 : index
    %159 = vector.load %arg5[%c24, %c0_59, %c0_60] : memref<27x8x256xf32, #tpu.memory_space<vmem>>, vector<1x8x256xf32>
    %160 = vector.shape_cast %159 : vector<1x8x256xf32> to vector<8x256xf32>
    %161 = vector.shape_cast %160 : vector<8x256xf32> to vector<1x8x256xf32>
    %162 = vector.broadcast %161 : vector<1x8x256xf32> to vector<8x8x256xf32>
    %163 = arith.mulf %158, %162 : vector<8x8x256xf32>
    %164 = arith.addf %157, %163 : vector<8x8x256xf32>
    %165 = vector.extract_strided_slice %143 {offsets = [0, 0, 0], sizes = [8, 8, 256], strides = [1, 1, 1]} : vector<10x8x256xf32> to vector<8x8x256xf32>
    %c7 = arith.constant 7 : index
    %c0_61 = arith.constant 0 : index
    %c0_62 = arith.constant 0 : index
    %166 = vector.load %arg5[%c7, %c0_61, %c0_62] : memref<27x8x256xf32, #tpu.memory_space<vmem>>, vector<1x8x256xf32>
    %167 = vector.shape_cast %166 : vector<1x8x256xf32> to vector<8x256xf32>
    %168 = vector.shape_cast %167 : vector<8x256xf32> to vector<1x8x256xf32>
    %169 = vector.broadcast %168 : vector<1x8x256xf32> to vector<8x8x256xf32>
    %170 = arith.mulf %165, %169 : vector<8x8x256xf32>
    %171 = arith.addf %164, %170 : vector<8x8x256xf32>
    %172 = vector.extract_strided_slice %143 {offsets = [1, 0, 0], sizes = [8, 8, 256], strides = [1, 1, 1]} : vector<10x8x256xf32> to vector<8x8x256xf32>
    %c16 = arith.constant 16 : index
    %c0_63 = arith.constant 0 : index
    %c0_64 = arith.constant 0 : index
    %173 = vector.load %arg5[%c16, %c0_63, %c0_64] : memref<27x8x256xf32, #tpu.memory_space<vmem>>, vector<1x8x256xf32>
    %174 = vector.shape_cast %173 : vector<1x8x256xf32> to vector<8x256xf32>
    %175 = vector.shape_cast %174 : vector<8x256xf32> to vector<1x8x256xf32>
    %176 = vector.broadcast %175 : vector<1x8x256xf32> to vector<8x8x256xf32>
    %177 = arith.mulf %172, %176 : vector<8x8x256xf32>
    %178 = arith.addf %171, %177 : vector<8x8x256xf32>
    %179 = vector.extract_strided_slice %143 {offsets = [2, 0, 0], sizes = [8, 8, 256], strides = [1, 1, 1]} : vector<10x8x256xf32> to vector<8x8x256xf32>
    %c25 = arith.constant 25 : index
    %c0_65 = arith.constant 0 : index
    %c0_66 = arith.constant 0 : index
    %180 = vector.load %arg5[%c25, %c0_65, %c0_66] : memref<27x8x256xf32, #tpu.memory_space<vmem>>, vector<1x8x256xf32>
    %181 = vector.shape_cast %180 : vector<1x8x256xf32> to vector<8x256xf32>
    %182 = vector.shape_cast %181 : vector<8x256xf32> to vector<1x8x256xf32>
    %183 = vector.broadcast %182 : vector<1x8x256xf32> to vector<8x8x256xf32>
    %184 = arith.mulf %179, %183 : vector<8x8x256xf32>
    %185 = arith.addf %178, %184 : vector<8x8x256xf32>
    %c224_i32_67 = arith.constant 224 : i32
    %186 = tpu.dynamic_rotate %143 by %c224_i32_67 dim 2 : vector<10x8x256xf32>, i32 -> vector<10x8x256xf32>
    %187 = vector.extract_strided_slice %186 {offsets = [0, 0, 0], sizes = [8, 8, 256], strides = [1, 1, 1]} : vector<10x8x256xf32> to vector<8x8x256xf32>
    %c8 = arith.constant 8 : index
    %c0_68 = arith.constant 0 : index
    %c0_69 = arith.constant 0 : index
    %188 = vector.load %arg5[%c8, %c0_68, %c0_69] : memref<27x8x256xf32, #tpu.memory_space<vmem>>, vector<1x8x256xf32>
    %189 = vector.shape_cast %188 : vector<1x8x256xf32> to vector<8x256xf32>
    %190 = vector.shape_cast %189 : vector<8x256xf32> to vector<1x8x256xf32>
    %191 = vector.broadcast %190 : vector<1x8x256xf32> to vector<8x8x256xf32>
    %192 = arith.mulf %187, %191 : vector<8x8x256xf32>
    %193 = arith.addf %185, %192 : vector<8x8x256xf32>
    %194 = vector.extract_strided_slice %186 {offsets = [1, 0, 0], sizes = [8, 8, 256], strides = [1, 1, 1]} : vector<10x8x256xf32> to vector<8x8x256xf32>
    %c17 = arith.constant 17 : index
    %c0_70 = arith.constant 0 : index
    %c0_71 = arith.constant 0 : index
    %195 = vector.load %arg5[%c17, %c0_70, %c0_71] : memref<27x8x256xf32, #tpu.memory_space<vmem>>, vector<1x8x256xf32>
    %196 = vector.shape_cast %195 : vector<1x8x256xf32> to vector<8x256xf32>
    %197 = vector.shape_cast %196 : vector<8x256xf32> to vector<1x8x256xf32>
    %198 = vector.broadcast %197 : vector<1x8x256xf32> to vector<8x8x256xf32>
    %199 = arith.mulf %194, %198 : vector<8x8x256xf32>
    %200 = arith.addf %193, %199 : vector<8x8x256xf32>
    %201 = vector.extract_strided_slice %186 {offsets = [2, 0, 0], sizes = [8, 8, 256], strides = [1, 1, 1]} : vector<10x8x256xf32> to vector<8x8x256xf32>
    %c26 = arith.constant 26 : index
    %c0_72 = arith.constant 0 : index
    %c0_73 = arith.constant 0 : index
    %202 = vector.load %arg5[%c26, %c0_72, %c0_73] : memref<27x8x256xf32, #tpu.memory_space<vmem>>, vector<1x8x256xf32>
    %203 = vector.shape_cast %202 : vector<1x8x256xf32> to vector<8x256xf32>
    %204 = vector.shape_cast %203 : vector<8x256xf32> to vector<1x8x256xf32>
    %205 = vector.broadcast %204 : vector<1x8x256xf32> to vector<8x8x256xf32>
    %206 = arith.mulf %201, %205 : vector<8x8x256xf32>
    %207 = arith.addf %200, %206 : vector<8x8x256xf32>
    %208 = vector.shape_cast %13 : vector<1x256xf32> to vector<1x1x256xf32>
    %209 = vector.broadcast %208 : vector<1x1x256xf32> to vector<8x8x256xf32>
    %210 = arith.addf %209, %78 : vector<8x8x256xf32>
    %211 = arith.addf %210, %142 : vector<8x8x256xf32>
    %212 = arith.addf %211, %207 : vector<8x8x256xf32>
    %c0_74 = arith.constant 0 : index
    %c0_75 = arith.constant 0 : index
    %c0_76 = arith.constant 0 : index
    %c0_77 = arith.constant 0 : index
    %213 = vector.load %arg7[%c0_74, %c0_75, %c0_76, %c0_77] : memref<1x8x8x256xf32, #tpu.memory_space<vmem>>, vector<1x8x8x256xf32>
    %214 = vector.shape_cast %213 : vector<1x8x8x256xf32> to vector<8x8x256xf32>
    %215 = vector.shape_cast %212 : vector<8x8x256xf32> to vector<1x8x8x256xf32>
    tpu.vector_store %arg7[%c0_74, %c0_75, %c0_76, %c0_77], %215 {strides = array<i32>} : memref<1x8x8x256xf32, #tpu.memory_space<vmem>>, vector<1x8x8x256xf32>,
    return
  }
  func.func @transform_0(%arg0: i32, %arg1: i32) -> (i32, i32, i32, i32) {
    %c0_i32 = arith.constant 0 : i32
    %c0_i32_0 = arith.constant 0 : i32
    %c0_i32_1 = arith.constant 0 : i32
    return %arg0, %arg1, %c0_i32, %c0_i32_0 : i32, i32, i32, i32
  }
  func.func @transform_1(%arg0: i32, %arg1: i32) -> (i32, i32, i32, i32) {
    %c8_i32 = arith.constant 8 : i32
    %0 = arith.muli %arg1, %c8_i32 : i32
    %c1_i32 = arith.constant 1 : i32
    %1 = arith.subi %0, %c1_i32 : i32
    %c0_i32 = arith.constant 0 : i32
    %2 = arith.maxsi %1, %c0_i32 : i32
    %c0_i32_0 = arith.constant 0 : i32
    %c0_i32_1 = arith.constant 0 : i32
    %c0_i32_2 = arith.constant 0 : i32
    return %arg0, %2, %c0_i32_0, %c0_i32_1 : i32, i32, i32, i32
  }
  func.func @transform_2(%arg0: i32, %arg1: i32) -> (i32, i32, i32, i32) {
    %c8_i32 = arith.constant 8 : i32
    %0 = arith.muli %arg1, %c8_i32 : i32
    %c8_i32_0 = arith.constant 8 : i32
    %1 = arith.addi %0, %c8_i32_0 : i32
    %c7_i32 = arith.constant 7 : i32
    %2 = arith.minsi %1, %c7_i32 : i32
    %c0_i32 = arith.constant 0 : i32
    %c0_i32_1 = arith.constant 0 : i32
    %c0_i32_2 = arith.constant 0 : i32
    return %arg0, %2, %c0_i32, %c0_i32_1 : i32, i32, i32, i32
  }
  func.func @transform_3(%arg0: i32, %arg1: i32) -> (i32, i32, i32) {
    %c0_i32 = arith.constant 0 : i32
    %c0_i32_0 = arith.constant 0 : i32
    %c0_i32_1 = arith.constant 0 : i32
    %c0_i32_2 = arith.constant 0 : i32
    return %c0_i32, %c0_i32_0, %c0_i32_1 : i32, i32, i32
  }
  func.func @transform_4(%arg0: i32, %arg1: i32) -> (i32, i32) {
    %c0_i32 = arith.constant 0 : i32
    %c0_i32_0 = arith.constant 0 : i32
    %c0_i32_1 = arith.constant 0 : i32
    return %c0_i32, %c0_i32_0 : i32, i32
  }
  func.func @transform_5(%arg0: i32, %arg1: i32) -> (i32, i32, i32, i32) {
    %c0_i32 = arith.constant 0 : i32
    %c0_i32_0 = arith.constant 0 : i32
    %c0_i32_1 = arith.constant 0 : i32
    return %arg0, %arg1, %c0_i32, %c0_i32_0 : i32, i32, i32, i32
  }
}

</mosaic_0001>

<llo_original>
// kernel: tpu_custom_call.1
$region0: #{tpu_custom_call.1}
  #allocation0 [shape = 'u32[]', space=smem, size = 0x4, offset = 0x4, fixed_abs, tag = 'smem constant byte address 0x4 - core index']
  #allocation1 [shape = 'u32[72,128]{1,0:T(1,128)}', space=vmem, size = 0x9000, scoped, tag = 'internal scratch']
  %s0 = inlined_call_operand.hbm [shape: f32[2,8,8,256], index: 0, kind: input, shape index: {}]
  %s1 = inlined_call_operand.hbm [shape: f32[2,8,8,256], index: 1, kind: input, shape index: {}]
  %s2 = inlined_call_operand.hbm [shape: f32[2,8,8,256], index: 2, kind: input, shape index: {}]
  %s3 = inlined_call_operand.hbm [shape: f32[27,8,256], index: 3, kind: input, shape index: {}]
  %s4 = inlined_call_operand.vmem [shape: f32[1,256], index: 4, kind: input, shape index: {}]
  %s5 = inlined_call_operand.hbm [shape: f32[2,8,8,256], index: 5, kind: output, shape index: {}]
  %s6 = sld [smem:[#allocation0]]
  $region69: #{tpu_custom_call.1} parent=0
    _
  %s8 = ssub.s32 1, %s6
  %s9 = scalar_select 0, %s8, %s6
  $region1: #{tpu_custom_call.1} parent=0
    #allocation2 [shape = 'u8[131072]{0}', space=vmem, size = 0x20000, scoped, tag = 'input window, operand 0']
    #allocation3 [shape = 's32[2]{0}', space=sflag, size = 0x8, scoped, tag = 'scoped memory for tpu_custom_call.1']
    #allocation4 [shape = 's32[2]{0}', space=sflag, size = 0x8, scoped, tag = 'scoped memory for tpu_custom_call.1']
    #allocation5 [shape = 'u8[16384]{0}', space=vmem, size = 0x4000, scoped, tag = 'input window, operand 1']
    #allocation6 [shape = 's32[2]{0}', space=sflag, size = 0x8, scoped, tag = 'scoped memory for tpu_custom_call.1']
    #allocation7 [shape = 'u8[16384]{0}', space=vmem, size = 0x4000, scoped, tag = 'input window, operand 2']
    #allocation8 [shape = 'u8[221184]{0}', space=vmem, size = 0x36000, scoped, tag = 'input window, operand 3, single buffered']
    #allocation9 [shape = 's32[1]{0}', space=sflag, size = 0x4, scoped, tag = 'scoped memory for tpu_custom_call.1']
    #allocation10 [shape = 'u8[131072]{0}', space=vmem, size = 0x20000, scoped, tag = 'output window, operand 0']
    %10 = vsyncpa [#allocation3], 0
    %s11 = scalar_lea.sflag [#allocation3], 1
    %12 = vsyncpa %s11, 0
    %13 = vsyncpa [#allocation6], 0
    %s14 = scalar_lea.sflag [#allocation6], 1
    %15 = vsyncpa %s14, 0
    %16 = vsyncpa [#allocation9], 0
    %17 = vsyncpa [#allocation4], 0
    %s18 = scalar_lea.sflag [#allocation4], 1
    %19 = vsyncpa %s18, 0
    loop: start=0, step=1, limit=4
    $region2: #{tpu_custom_call.1} parent=1 // loop_pre_header
      _
    $region3: #{tpu_custom_call.1} parent=1 // loop_header
      %s21 = sphi 0, %s25
      %p22 = scmp.ge.s32.totalorder %s21, 4
      %s28 = sphi 0, %s40
      %s29 = sphi 0, %s36
      %s30 = sphi 0, %s28
      %s31 = sphi 0, %s29
      %s32 = sphi 0, %s30
      %s33 = sphi 0, %s31
      %s45 = sphi 0, %s47
      %s48 = sphi 0, %s45
      %s49 = sphi 0, %s48
      %s65 = sphi 0, %s49
      %s81 = sphi 0, %s83
      %s84 = sphi 0, %s81
      %s85 = sphi 0, %s84
      %s101 = sphi 0, %s85
      %s117 = sphi 0, %s119
      %s120 = sphi 0, %s117
      %s121 = sphi 0, %s120
      %s137 = sphi 0, %s121
      %s141 = sphi 0, %s141
      %s143 = sphi 0, %s141
      %s144 = sphi 0, %s143
      %s158 = sphi 0, %s144
      %s162 = sphi 0, %s162
      %s164 = sphi 0, %s162
      %s165 = sphi 0, %s164
      %s179 = sphi 0, %s165
      %s187 = sphi 0, %s189
      %s190 = sphi 0, %s187
      %s191 = sphi 0, %s190
      %s207 = sphi 0, %s191
    $region4: #{tpu_custom_call.1} parent=1 // loop_header_branch
      %24 = sbr.rel (%p22) target = $region8
    $region5: #{tpu_custom_call.1} parent=1 // loop_body
      %s26 = ssub.s32 %s21, 1
      %s27 = ssub.s32 %s21, 2
      %s34 = sadd.s32 1, %s29
      %p35 = scmp.ge.s32.totalorder %s34, 1
      %s36 = scalar_select %p35, 0, %s34
      %s37 = sadd.s32 1, %s28
      %s38 = scalar_select %p35, %s37, %s28
      %p39 = scmp.ge.s32.totalorder %s38, 2
      %s40 = scalar_select %p39, 0, %s38
      %s41 = ssub.s32 %s28, %s40
      %s42 = ssub.s32 %s29, %s36
      %s43 = sor.u32 %s41, %s42
      %p44 = scmp.eq.s32.totalorder %s43, 0
      %s46 = sadd.s32 %s45, 1
      %s47 = scalar_select %p44, %s45, %s46
      %p50 = pneg %p44
      %p51 = scmp.eq.s32.totalorder %s21, 1
      %p52 = por %p50, %p51
      %p53 = scmp.ne.s32.totalorder %s45, %s48
      %p54 = scmp.eq.s32.totalorder %s21, 0
      %p55 = por %p53, %p54
      %p56 = scmp.ne.s32.totalorder %s45, %s48
      %p57 = scmp.eq.s32.totalorder %s26, 1
      %p58 = por %p56, %p57
      %p59 = scmp.ne.s32.totalorder %s48, %s49
      %p60 = scmp.eq.s32.totalorder %s26, 0
      %p61 = por %p59, %p60
      %p62 = scmp.ne.s32.totalorder %s48, %s49
      %p63 = scmp.eq.s32.totalorder %s27, 1
      %p64 = por %p62, %p63
      %p66 = scmp.ne.s32.totalorder %s49, %s65
      %p67 = scmp.eq.s32.totalorder %s27, 0
      %p68 = por %p66, %p67
      %s69 = smul.u32 %s29, 8
      %s70 = ssub.s32 %s69, 1
      %p71 = scmp.gt.s32.totalorder %s70, 0
      %s72 = scalar_select %p71, %s70, 0
      %s73 = smul.u32 %s36, 8
      %s74 = ssub.s32 %s73, 1
      %p75 = scmp.gt.s32.totalorder %s74, 0
      %s76 = scalar_select %p75, %s74, 0
      %s77 = ssub.s32 %s28, %s40
      %s78 = ssub.s32 %s72, %s76
      %s79 = sor.u32 %s77, %s78
      %p80 = scmp.eq.s32.totalorder %s79, 0
      %s82 = sadd.s32 %s81, 1
      %s83 = scalar_select %p80, %s81, %s82
      %p86 = pneg %p80
      %p87 = scmp.eq.s32.totalorder %s21, 1
      %p88 = por %p86, %p87
      %p89 = scmp.ne.s32.totalorder %s81, %s84
      %p90 = scmp.eq.s32.totalorder %s21, 0
      %p91 = por %p89, %p90
      %p92 = scmp.ne.s32.totalorder %s81, %s84
      %p93 = scmp.eq.s32.totalorder %s26, 1
      %p94 = por %p92, %p93
      %p95 = scmp.ne.s32.totalorder %s84, %s85
      %p96 = scmp.eq.s32.totalorder %s26, 0
      %p97 = por %p95, %p96
      %p98 = scmp.ne.s32.totalorder %s84, %s85
      %p99 = scmp.eq.s32.totalorder %s27, 1
      %p100 = por %p98, %p99
      %p102 = scmp.ne.s32.totalorder %s85, %s101
      %p103 = scmp.eq.s32.totalorder %s27, 0
      %p104 = por %p102, %p103
      %s105 = smul.u32 %s29, 8
      %s106 = sadd.s32 %s105, 8
      %p107 = scmp.lt.s32.totalorder %s106, 7
      %s108 = scalar_select %p107, %s106, 7
      %s109 = smul.u32 %s36, 8
      %s110 = sadd.s32 %s109, 8
      %p111 = scmp.lt.s32.totalorder %s110, 7
      %s112 = scalar_select %p111, %s110, 7
      %s113 = ssub.s32 %s28, %s40
      %s114 = ssub.s32 %s108, %s112
      %s115 = sor.u32 %s113, %s114
      %p116 = scmp.eq.s32.totalorder %s115, 0
      %s118 = sadd.s32 %s117, 1
      %s119 = scalar_select %p116, %s117, %s118
      %p122 = pneg %p116
      %p123 = scmp.eq.s32.totalorder %s21, 1
      %p124 = por %p122, %p123
      %p125 = scmp.ne.s32.totalorder %s117, %s120
      %p126 = scmp.eq.s32.totalorder %s21, 0
      %p127 = por %p125, %p126
      %p128 = scmp.ne.s32.totalorder %s117, %s120
      %p129 = scmp.eq.s32.totalorder %s26, 1
      %p130 = por %p128, %p129
      %p131 = scmp.ne.s32.totalorder %s120, %s121
      %p132 = scmp.eq.s32.totalorder %s26, 0
      %p133 = por %p131, %p132
      %p134 = scmp.ne.s32.totalorder %s120, %s121
      %p135 = scmp.eq.s32.totalorder %s27, 1
      %p136 = por %p134, %p135
      %p138 = scmp.ne.s32.totalorder %s121, %s137
      %p139 = scmp.eq.s32.totalorder %s27, 0
      %p140 = por %p138, %p139
      %s142 = sadd.s32 %s141, 1
      %p145 = scmp.eq.s32.totalorder %s21, 1
      %p146 = scmp.ne.s32.totalorder %s141, %s143
      %p147 = scmp.eq.s32.totalorder %s21, 0
      %p148 = por %p146, %p147
      %p149 = scmp.ne.s32.totalorder %s141, %s143
      %p150 = scmp.eq.s32.totalorder %s26, 1
      %p151 = por %p149, %p150
      %p152 = scmp.ne.s32.totalorder %s143, %s144
      %p153 = scmp.eq.s32.totalorder %s26, 0
      %p154 = por %p152, %p153
      %p155 = scmp.ne.s32.totalorder %s143, %s144
      %p156 = scmp.eq.s32.totalorder %s27, 1
      %p157 = por %p155, %p156
      %p159 = scmp.ne.s32.totalorder %s144, %s158
      %p160 = scmp.eq.s32.totalorder %s27, 0
      %p161 = por %p159, %p160
      %s163 = sadd.s32 %s162, 1
      %p166 = scmp.eq.s32.totalorder %s21, 1
      %p167 = scmp.ne.s32.totalorder %s162, %s164
      %p168 = scmp.eq.s32.totalorder %s21, 0
      %p169 = por %p167, %p168
      %p170 = scmp.ne.s32.totalorder %s162, %s164
      %p171 = scmp.eq.s32.totalorder %s26, 1
      %p172 = por %p170, %p171
      %p173 = scmp.ne.s32.totalorder %s164, %s165
      %p174 = scmp.eq.s32.totalorder %s26, 0
      %p175 = por %p173, %p174
      %p176 = scmp.ne.s32.totalorder %s164, %s165
      %p177 = scmp.eq.s32.totalorder %s27, 1
      %p178 = por %p176, %p177
      %p180 = scmp.ne.s32.totalorder %s165, %s179
      %p181 = scmp.eq.s32.totalorder %s27, 0
      %p182 = por %p180, %p181
      %s183 = ssub.s32 %s28, %s40
      %s184 = ssub.s32 %s29, %s36
      %s185 = sor.u32 %s183, %s184
      %p186 = scmp.eq.s32.totalorder %s185, 0
      %s188 = sadd.s32 %s187, 1
      %s189 = scalar_select %p186, %s187, %s188
      %p192 = pneg %p186
      %p193 = scmp.eq.s32.totalorder %s21, 1
      %p194 = por %p192, %p193
      %p195 = scmp.ne.s32.totalorder %s187, %s190
      %p196 = scmp.eq.s32.totalorder %s21, 0
      %p197 = por %p195, %p196
      %p198 = scmp.ne.s32.totalorder %s187, %s190
      %p199 = scmp.eq.s32.totalorder %s26, 1
      %p200 = por %p198, %p199
      %p201 = scmp.ne.s32.totalorder %s190, %s191
      %p202 = scmp.eq.s32.totalorder %s26, 0
      %p203 = por %p201, %p202
      %p204 = scmp.ne.s32.totalorder %s190, %s191
      %p205 = scmp.eq.s32.totalorder %s27, 1
      %p206 = por %p204, %p205
      %p208 = scmp.ne.s32.totalorder %s191, %s207
      %p209 = scmp.eq.s32.totalorder %s27, 0
      %p210 = por %p208, %p209
      %p211 = scmp.le.s32.totalorder 1, %s21
      %p212 = scmp.lt.s32.totalorder %s21, 3
      %p213 = pnand %p211, %p212
      %p214 = pneg %p213
      // Predicated region
      $region9: #{tpu_custom_call.1} parent=5 // pred_check
        _
      $region10: #{tpu_custom_call.1} parent=5 // pred_check_branch
        %216 = sbr.rel (%p213) target = $region12
      $region11: #{tpu_custom_call.1} parent=5 // pred_region
        %s217 = ssub.s32 %s21, 1
        // Predicated region
        $region13: #{tpu_custom_call.1} parent=11 // pred_check
          %p218 = pneg %p154
        $region14: #{tpu_custom_call.1} parent=11 // pred_check_branch
          %220 = sbr.rel (%p218) target = $region16
        $region15: #{tpu_custom_call.1} parent=11 // pred_region
          %222 = vsyncadd [#allocation9], 0
          %s223 = sshll.u32 %s3, 4
          %s224 = int_to_ptr.hbm [resolvable:$true] %s223
          %s225 = sshll.u32 [#allocation8], 4
          %s226 = int_to_ptr.vmem [resolvable:$true] %s225
          %231 = dma.hbm_to_vmem [thread:$0]  %s224, 6912, %s226, [#allocation9], 256, 256, 16
        $region16: #{tpu_custom_call.1} parent=11 // pred_fallthru
          _
        // Predicated region
        $region17: #{tpu_custom_call.1} parent=11 // pred_check
          %p232 = pneg %p175
        $region18: #{tpu_custom_call.1} parent=11 // pred_check_branch
          %234 = sbr.rel (%p232) target = $region20
        $region19: #{tpu_custom_call.1} parent=11 // pred_region
          _
        $region20: #{tpu_custom_call.1} parent=11 // pred_fallthru
          _
      $region12: #{tpu_custom_call.1} parent=5 // pred_fallthru
        _
      %p235 = scmp.lt.s32.totalorder %s21, 2
      // Predicated region
      $region21: #{tpu_custom_call.1} parent=5 // pred_check
        %p236 = pneg %p235
      $region22: #{tpu_custom_call.1} parent=5 // pred_check_branch
        %238 = sbr.rel (%p236) target = $region24
      $region23: #{tpu_custom_call.1} parent=5 // pred_region
        // Predicated region
        $region25: #{tpu_custom_call.1} parent=23 // pred_check
          %p239 = pneg %p55
        $region26: #{tpu_custom_call.1} parent=23 // pred_check_branch
          %241 = sbr.rel (%p239) target = $region28
        $region27: #{tpu_custom_call.1} parent=23 // pred_region
          %s242 = sand.u32 %s45, 1
          %s243 = scalar_lea.sflag [#allocation3], %s242
          %s244 = sand.u32 %s45, 1
          %s245 = smul.addr %s244, 128
          %s246 = scalar_lea.vmem [#allocation2], %s245
          %s247 = smul.u32 8, %s29
          %249 = vsyncadd %s243, 0
          %s250 = smul.addr %s247, 2
          %s251 = smul.addr %s28, 16
          %s252 = sadd.s32 %s250, %s251
          %s253 = smul.addr %s252, 8
          %s254 = scalar_lea.hbm %s0, %s253
          %s255 = sshll.u32 %s254, 4
          %s256 = int_to_ptr.hbm [resolvable:$true] %s255
          %s257 = sshll.u32 %s246, 4
          %s258 = int_to_ptr.vmem [resolvable:$true] %s257
          %263 = dma.hbm_to_vmem [thread:$0]  %s256, 2048, %s258, %s243, 256, 256, 16
        $region28: #{tpu_custom_call.1} parent=23 // pred_fallthru
          _
        // Predicated region
        $region29: #{tpu_custom_call.1} parent=23 // pred_check
          %p264 = pneg %p91
        $region30: #{tpu_custom_call.1} parent=23 // pred_check_branch
          %266 = sbr.rel (%p264) target = $region32
        $region31: #{tpu_custom_call.1} parent=23 // pred_region
          %s267 = sand.u32 %s21, 1
          %s268 = scalar_lea.sflag [#allocation6], %s267
          %s269 = sand.u32 %s81, 1
          %s270 = smul.addr %s269, 16
          %s271 = scalar_lea.vmem [#allocation5], %s270
          %s272 = smul.u32 %s29, 8
          %s273 = ssub.s32 %s272, 1
          %p274 = scmp.gt.s32.totalorder %s273, 0
          %s275 = scalar_select %p274, %s273, 0
          %277 = vsyncadd %s268, 0
          %s278 = smul.addr %s275, 2
          %s279 = smul.addr %s28, 16
          %s280 = sadd.s32 %s278, %s279
          %s281 = smul.addr %s280, 8
          %s282 = scalar_lea.hbm %s1, %s281
          %s284 = sshll.u32 %s282, 4
          %s285 = int_to_ptr.hbm [resolvable:$true] %s284
          %s286 = sshll.u32 %s271, 4
          %s287 = int_to_ptr.vmem [resolvable:$true] %s286
          %289 = dma.hbm_to_vmem [thread:$0]  %s285, 256, %s287, %s268
        $region32: #{tpu_custom_call.1} parent=23 // pred_fallthru
          _
        // Predicated region
        $region33: #{tpu_custom_call.1} parent=23 // pred_check
          %p290 = pneg %p127
        $region34: #{tpu_custom_call.1} parent=23 // pred_check_branch
          %292 = sbr.rel (%p290) target = $region36
        $region35: #{tpu_custom_call.1} parent=23 // pred_region
          %s293 = sand.u32 %s21, 1
          %s294 = scalar_lea.sflag [#allocation6], %s293
          %s295 = sand.u32 %s117, 1
          %s296 = smul.addr %s295, 16
          %s297 = scalar_lea.vmem [#allocation7], %s296
          %s298 = smul.u32 %s29, 8
          %s299 = sadd.s32 %s298, 8
          %p300 = scmp.lt.s32.totalorder %s299, 7
          %s301 = scalar_select %p300, %s299, 7
          %303 = vsyncadd %s294, 0
          %s304 = smul.addr %s301, 2
          %s305 = smul.addr %s28, 16
          %s306 = sadd.s32 %s304, %s305
          %s307 = smul.addr %s306, 8
          %s308 = scalar_lea.hbm %s2, %s307
          %s310 = sshll.u32 %s308, 4
          %s311 = int_to_ptr.hbm [resolvable:$true] %s310
          %s312 = sshll.u32 %s297, 4
          %s313 = int_to_ptr.vmem [resolvable:$true] %s312
          %315 = dma.hbm_to_vmem [thread:$0]  %s311, 256, %s313, %s294
        $region36: #{tpu_custom_call.1} parent=23 // pred_fallthru
          _
      $region24: #{tpu_custom_call.1} parent=5 // pred_fallthru
        _
      %p316 = scmp.le.s32.totalorder 1, %s21
      %p317 = scmp.lt.s32.totalorder %s21, 3
      %p318 = pnand %p316, %p317
      %p319 = pneg %p318
      // Predicated region
      $region37: #{tpu_custom_call.1} parent=5 // pred_check
        _
      $region38: #{tpu_custom_call.1} parent=5 // pred_check_branch
        %321 = sbr.rel (%p318) target = $region40
      $region39: #{tpu_custom_call.1} parent=5 // pred_region
        %s322 = ssub.s32 %s21, 1
        %s323 = sand.u32 %s48, 1
        %s324 = scalar_lea.sflag [#allocation3], %s323
        %s325 = sand.u32 %s48, 1
        %s326 = smul.addr %s325, 128
        %s327 = scalar_lea.vmem [#allocation2], %s326
        // Predicated region
        $region41: #{tpu_custom_call.1} parent=39 // pred_check
          %p328 = pneg %p61
        $region42: #{tpu_custom_call.1} parent=39 // pred_check_branch
          %330 = sbr.rel (%p328) target = $region44
        $region43: #{tpu_custom_call.1} parent=39 // pred_region
          %332 = dma.done %s324, 2048
        $region44: #{tpu_custom_call.1} parent=39 // pred_fallthru
          _
        %s333 = sand.u32 %s26, 1
        %s334 = scalar_lea.sflag [#allocation6], %s333
        %s335 = sand.u32 %s84, 1
        %s336 = smul.addr %s335, 16
        %s337 = scalar_lea.vmem [#allocation5], %s336
        // Predicated region
        $region45: #{tpu_custom_call.1} parent=39 // pred_check
          %p338 = pneg %p97
        $region46: #{tpu_custom_call.1} parent=39 // pred_check_branch
          %340 = sbr.rel (%p338) target = $region48
        $region47: #{tpu_custom_call.1} parent=39 // pred_region
          %342 = dma.done %s334, 256
        $region48: #{tpu_custom_call.1} parent=39 // pred_fallthru
          _
        %s343 = sand.u32 %s26, 1
        %s344 = scalar_lea.sflag [#allocation6], %s343
        %s345 = sand.u32 %s120, 1
        %s346 = smul.addr %s345, 16
        %s347 = scalar_lea.vmem [#allocation7], %s346
        // Predicated region
        $region49: #{tpu_custom_call.1} parent=39 // pred_check
          %p348 = pneg %p133
        $region50: #{tpu_custom_call.1} parent=39 // pred_check_branch
          %350 = sbr.rel (%p348) target = $region52
        $region51: #{tpu_custom_call.1} parent=39 // pred_region
          %352 = dma.done %s344, 256
        $region52: #{tpu_custom_call.1} parent=39 // pred_fallthru
          _
        // Predicated region
        $region53: #{tpu_custom_call.1} parent=39 // pred_check
          %p353 = pneg %p154
        $region54: #{tpu_custom_call.1} parent=39 // pred_check_branch
          %355 = sbr.rel (%p353) target = $region56
        $region55: #{tpu_custom_call.1} parent=39 // pred_region
          %357 = dma.done [#allocation9], 6912
        $region56: #{tpu_custom_call.1} parent=39 // pred_fallthru
          _
        %s358 = sand.u32 %s48, 1
        %s359 = scalar_lea.sflag [#allocation3], %s358
        %s360 = sand.u32 %s48, 1
        %s361 = smul.addr %s360, 128
        %s362 = scalar_lea.vmem [#allocation2], %s361
        %p363 = pneg %p61
        %p364 = pneg %p58
        %s365 = sand.u32 %s26, 1
        %s366 = scalar_lea.sflag [#allocation6], %s365
        %s367 = sand.u32 %s84, 1
        %s368 = smul.addr %s367, 16
        %s369 = scalar_lea.vmem [#allocation5], %s368
        %p370 = pneg %p97
        %p371 = pneg %p94
        %s372 = sand.u32 %s26, 1
        %s373 = scalar_lea.sflag [#allocation6], %s372
        %s374 = sand.u32 %s120, 1
        %s375 = smul.addr %s374, 16
        %s376 = scalar_lea.vmem [#allocation7], %s375
        %p377 = pneg %p133
        %p378 = pneg %p130
        %p379 = pneg %p154
        %p380 = pneg %p151
        %p381 = pneg %p175
        %p382 = pneg %p172
        %p383 = pneg %p203
        %p384 = pneg %p200
        %s385 = sand.u32 %s190, 1
        %s386 = scalar_lea.sflag [#allocation4], %s385
        %s387 = sand.u32 %s190, 1
        %s388 = smul.addr %s387, 128
        %s389 = scalar_lea.vmem [#allocation10], %s388
        %s390 = smul.u32 8, %s31
        %s391 = smul.u32 %s31, 8
        %s392 = ssub.s32 %s391, 1
        %p393 = scmp.gt.s32.totalorder %s392, 0
        %s394 = scalar_select %p393, %s392, 0
        %s395 = smul.u32 %s31, 8
        %s396 = sadd.s32 %s395, 8
        %p397 = scmp.lt.s32.totalorder %s396, 7
        %s398 = scalar_select %p397, %s396, 7
        %s399 = smul.u32 8, %s31
        %v400 = vld [vmem:[%s327] sm:$0xff]
        %v401 = vld [vmem:[%s327 + $0x8] sm:$0xff]
        %v402 = vld [vmem:[%s327 + $0x10] sm:$0xff]
        %v403 = vld [vmem:[%s327 + $0x18] sm:$0xff]
        %v404 = vld [vmem:[%s327 + $0x20] sm:$0xff]
        %v405 = vld [vmem:[%s327 + $0x28] sm:$0xff]
        %v406 = vld [vmem:[%s327 + $0x30] sm:$0xff]
        %v407 = vld [vmem:[%s327 + $0x38] sm:$0xff]
        %v408 = vld [vmem:[%s327 + $0x40] sm:$0xff]
        %v409 = vld [vmem:[%s327 + $0x48] sm:$0xff]
        %v410 = vld [vmem:[%s327 + $0x50] sm:$0xff]
        %v411 = vld [vmem:[%s327 + $0x58] sm:$0xff]
        %v412 = vld [vmem:[%s327 + $0x60] sm:$0xff]
        %v413 = vld [vmem:[%s327 + $0x68] sm:$0xff]
        %v414 = vld [vmem:[%s327 + $0x70] sm:$0xff]
        %v415 = vld [vmem:[%s327 + $0x78] sm:$0xff]
        %p416 = scmp.gt.s32.totalorder %s31, 0
        %v417 = vld [vmem:[%s337] sm:$0xff]
        %v418 = vld [vmem:[%s337 + $0x8] sm:$0xff]
        %s419 = scalar_select %p416, 1, 0
        %v420 = vstv %s419
        %vm421 = vcmp.eq.s32.totalorder %v420, 1
        %v422 = vsel %vm421, %v417, 0.0
        %v423 = vsel %vm421, %v418, 0.0
        %p424 = scmp.lt.s32.totalorder %s31, 0
        %v425 = vld [vmem:[%s347] sm:$0xff]
        %v426 = vld [vmem:[%s347 + $0x8] sm:$0xff]
        %s427 = scalar_select %p424, 1, 0
        %v428 = vstv %s427
        %vm429 = vcmp.eq.s32.totalorder %v428, 1
        %v430 = vsel %vm429, %v425, 0.0
        %v431 = vsel %vm429, %v426, 0.0
        %v432 = vld [vmem:[%s4] sm:$0x3]
        %v433 = vrot.slane %v422, 7
        %v434 = vrot.slane %v423, 7
        %v435 = vrot.slane %v400, 7
        %v436 = vrot.slane %v401, 7
        %v437 = vrot.slane %v402, 7
        %v438 = vrot.slane %v403, 7
        %v439 = vrot.slane %v404, 7
        %v440 = vrot.slane %v405, 7
        %v441 = vrot.slane %v406, 7
        %v442 = vrot.slane %v407, 7
        %v443 = vrot.slane %v408, 7
        %v444 = vrot.slane %v409, 7
        %v445 = vrot.slane %v410, 7
        %v446 = vrot.slane %v411, 7
        %v447 = vrot.slane %v412, 7
        %v448 = vrot.slane %v413, 7
        %v449 = vrot.slane %v414, 7
        %v450 = vrot.slane %v415, 7
        %v451 = vrot.slane %v430, 7
        %v452 = vrot.slane %v431, 7
        %453 = vrot.lane.b32.xlu0 %v433, 32
        %v454 = vpop.permute.xlu0 %453
        %455 = vrot.lane.b32.xlu0 %v435, 32
        %v456 = vpop.permute.xlu0 %455
        %457 = vrot.lane.b32.xlu0 %v437, 32
        %v458 = vpop.permute.xlu0 %457
        %459 = vrot.lane.b32.xlu0 %v439, 32
        %v460 = vpop.permute.xlu0 %459
        %461 = vrot.lane.b32.xlu0 %v441, 32
        %v462 = vpop.permute.xlu0 %461
        %463 = vrot.lane.b32.xlu0 %v443, 32
        %v464 = vpop.permute.xlu0 %463
        %465 = vrot.lane.b32.xlu0 %v445, 32
        %v466 = vpop.permute.xlu0 %465
        %467 = vrot.lane.b32.xlu0 %v447, 32
        %v468 = vpop.permute.xlu0 %467
        %469 = vrot.lane.b32.xlu0 %v449, 32
        %v470 = vpop.permute.xlu0 %469
        %471 = vrot.lane.b32.xlu0 %v451, 32
        %v472 = vpop.permute.xlu0 %471
        %473 = vrot.lane.b32.xlu0 %v434, 32
        %v474 = vpop.permute.xlu0 %473
        %475 = vrot.lane.b32.xlu0 %v436, 32
        %v476 = vpop.permute.xlu0 %475
        %477 = vrot.lane.b32.xlu0 %v438, 32
        %v478 = vpop.permute.xlu0 %477
        %479 = vrot.lane.b32.xlu0 %v440, 32
        %v480 = vpop.permute.xlu0 %479
        %481 = vrot.lane.b32.xlu0 %v442, 32
        %v482 = vpop.permute.xlu0 %481
        %483 = vrot.lane.b32.xlu0 %v444, 32
        %v484 = vpop.permute.xlu0 %483
        %485 = vrot.lane.b32.xlu0 %v446, 32
        %v486 = vpop.permute.xlu0 %485
        %487 = vrot.lane.b32.xlu0 %v448, 32
        %v488 = vpop.permute.xlu0 %487
        %489 = vrot.lane.b32.xlu0 %v450, 32
        %v490 = vpop.permute.xlu0 %489
        %491 = vrot.lane.b32.xlu0 %v452, 32
        %v492 = vpop.permute.xlu0 %491
        %v493 = vlaneseq
        %v494 = vand.u32 %v493, 127
        %vm495 = vcmp.lt.s32.totalorder %v494, 32
        %v496 = vsel %vm495, %v454, %v474
        %v497 = vsel %vm495, %v456, %v476
        %v498 = vsel %vm495, %v458, %v478
        %v499 = vsel %vm495, %v460, %v480
        %v500 = vsel %vm495, %v462, %v482
        %v501 = vsel %vm495, %v464, %v484
        %v502 = vsel %vm495, %v466, %v486
        %v503 = vsel %vm495, %v468, %v488
        %v504 = vsel %vm495, %v470, %v490
        %v505 = vsel %vm495, %v472, %v492
        %v506 = vsel %vm495, %v474, %v454
        %v507 = vsel %vm495, %v476, %v456
        %v508 = vsel %vm495, %v478, %v458
        %v509 = vsel %vm495, %v480, %v460
        %v510 = vsel %vm495, %v482, %v462
        %v511 = vsel %vm495, %v484, %v464
        %v512 = vsel %vm495, %v486, %v466
        %v513 = vsel %vm495, %v488, %v468
        %v514 = vsel %vm495, %v490, %v470
        %v515 = vsel %vm495, %v492, %v472
        %v516 = vld [vmem:[#allocation8] sm:$0xff]
        %v517 = vld [vmem:[#allocation8 + $0x8] sm:$0xff]
        %v518 = vmul.f32 %v506, %v516
        %v519 = vmul.f32 %v496, %v517
        %v520 = vmul.f32 %v507, %v516
        %v521 = vmul.f32 %v497, %v517
        %v522 = vmul.f32 %v508, %v516
        %v523 = vmul.f32 %v498, %v517
        %v524 = vmul.f32 %v509, %v516
        %v525 = vmul.f32 %v499, %v517
        %v526 = vmul.f32 %v510, %v516
        %v527 = vmul.f32 %v500, %v517
        %v528 = vmul.f32 %v511, %v516
        %v529 = vmul.f32 %v501, %v517
        %v530 = vmul.f32 %v512, %v516
        %v531 = vmul.f32 %v502, %v517
        %v532 = vmul.f32 %v513, %v516
        %v533 = vmul.f32 %v503, %v517
        %s534 = scalar_lea.vmem [#allocation8], 144
        %v535 = vld [vmem:[%s534] sm:$0xff]
        %v536 = vld [vmem:[%s534 + $0x8] sm:$0xff]
        %v537 = vmul.f32 %v507, %v535
        %v538 = vmul.f32 %v497, %v536
        %v539 = vmul.f32 %v508, %v535
        %v540 = vmul.f32 %v498, %v536
        %v541 = vmul.f32 %v509, %v535
        %v542 = vmul.f32 %v499, %v536
        %v543 = vmul.f32 %v510, %v535
        %v544 = vmul.f32 %v500, %v536
        %v545 = vmul.f32 %v511, %v535
        %v546 = vmul.f32 %v501, %v536
        %v547 = vmul.f32 %v512, %v535
        %v548 = vmul.f32 %v502, %v536
        %v549 = vmul.f32 %v513, %v535
        %v550 = vmul.f32 %v503, %v536
        %v551 = vmul.f32 %v514, %v535
        %v552 = vmul.f32 %v504, %v536
        %v553 = vadd.f32 %v518, %v537
        %v554 = vadd.f32 %v519, %v538
        %v555 = vadd.f32 %v520, %v539
        %v556 = vadd.f32 %v521, %v540
        %v557 = vadd.f32 %v522, %v541
        %v558 = vadd.f32 %v523, %v542
        %v559 = vadd.f32 %v524, %v543
        %v560 = vadd.f32 %v525, %v544
        %v561 = vadd.f32 %v526, %v545
        %v562 = vadd.f32 %v527, %v546
        %v563 = vadd.f32 %v528, %v547
        %v564 = vadd.f32 %v529, %v548
        %v565 = vadd.f32 %v530, %v549
        %v566 = vadd.f32 %v531, %v550
        %v567 = vadd.f32 %v532, %v551
        %v568 = vadd.f32 %v533, %v552
        %s569 = scalar_lea.vmem [#allocation8], 288
        %v570 = vld [vmem:[%s569] sm:$0xff]
        %v571 = vld [vmem:[%s569 + $0x8] sm:$0xff]
        %v572 = vmul.f32 %v508, %v570
        %v573 = vmul.f32 %v498, %v571
        %v574 = vmul.f32 %v509, %v570
        %v575 = vmul.f32 %v499, %v571
        %v576 = vmul.f32 %v510, %v570
        %v577 = vmul.f32 %v500, %v571
        %v578 = vmul.f32 %v511, %v570
        %v579 = vmul.f32 %v501, %v571
        %v580 = vmul.f32 %v512, %v570
        %v581 = vmul.f32 %v502, %v571
        %v582 = vmul.f32 %v513, %v570
        %v583 = vmul.f32 %v503, %v571
        %v584 = vmul.f32 %v514, %v570
        %v585 = vmul.f32 %v504, %v571
        %v586 = vmul.f32 %v515, %v570
        %v587 = vmul.f32 %v505, %v571
        %v588 = vadd.f32 %v553, %v572
        %v589 = vadd.f32 %v554, %v573
        %v590 = vadd.f32 %v555, %v574
        %v591 = vadd.f32 %v556, %v575
        %v592 = vadd.f32 %v557, %v576
        %v593 = vadd.f32 %v558, %v577
        %v594 = vadd.f32 %v559, %v578
        %v595 = vadd.f32 %v560, %v579
        %v596 = vadd.f32 %v561, %v580
        %v597 = vadd.f32 %v562, %v581
        %v598 = vadd.f32 %v563, %v582
        %v599 = vadd.f32 %v564, %v583
        %v600 = vadd.f32 %v565, %v584
        %v601 = vadd.f32 %v566, %v585
        %v602 = vadd.f32 %v567, %v586
        %v603 = vadd.f32 %v568, %v587
        %s604 = scalar_lea.vmem [#allocation8], 16
        %v605 = vld [vmem:[%s604] sm:$0xff]
        %v606 = vld [vmem:[%s604 + $0x8] sm:$0xff]
        %v607 = vmul.f32 %v433, %v605
        %v608 = vmul.f32 %v434, %v606
        %v609 = vmul.f32 %v435, %v605
        %v610 = vmul.f32 %v436, %v606
        %v611 = vmul.f32 %v437, %v605
        %v612 = vmul.f32 %v438, %v606
        %v613 = vmul.f32 %v439, %v605
        %v614 = vmul.f32 %v440, %v606
        %v615 = vmul.f32 %v441, %v605
        %v616 = vmul.f32 %v442, %v606
        %v617 = vmul.f32 %v443, %v605
        %v618 = vmul.f32 %v444, %v606
        %v619 = vmul.f32 %v445, %v605
        %v620 = vmul.f32 %v446, %v606
        %v621 = vmul.f32 %v447, %v605
        %v622 = vmul.f32 %v448, %v606
        %v623 = vadd.f32 %v588, %v607
        %v624 = vadd.f32 %v589, %v608
        %v625 = vadd.f32 %v590, %v609
        %v626 = vadd.f32 %v591, %v610
        %v627 = vadd.f32 %v592, %v611
        %v628 = vadd.f32 %v593, %v612
        %v629 = vadd.f32 %v594, %v613
        %v630 = vadd.f32 %v595, %v614
        %v631 = vadd.f32 %v596, %v615
        %v632 = vadd.f32 %v597, %v616
        %v633 = vadd.f32 %v598, %v617
        %v634 = vadd.f32 %v599, %v618
        %v635 = vadd.f32 %v600, %v619
        %v636 = vadd.f32 %v601, %v620
        %v637 = vadd.f32 %v602, %v621
        %v638 = vadd.f32 %v603, %v622
        %s639 = scalar_lea.vmem [#allocation8], 160
        %v640 = vld [vmem:[%s639] sm:$0xff]
        %v641 = vld [vmem:[%s639 + $0x8] sm:$0xff]
        %v642 = vmul.f32 %v435, %v640
        %v643 = vmul.f32 %v436, %v641
        %v644 = vmul.f32 %v437, %v640
        %v645 = vmul.f32 %v438, %v641
        %v646 = vmul.f32 %v439, %v640
        %v647 = vmul.f32 %v440, %v641
        %v648 = vmul.f32 %v441, %v640
        %v649 = vmul.f32 %v442, %v641
        %v650 = vmul.f32 %v443, %v640
        %v651 = vmul.f32 %v444, %v641
        %v652 = vmul.f32 %v445, %v640
        %v653 = vmul.f32 %v446, %v641
        %v654 = vmul.f32 %v447, %v640
        %v655 = vmul.f32 %v448, %v641
        %v656 = vmul.f32 %v449, %v640
        %v657 = vmul.f32 %v450, %v641
        %v658 = vadd.f32 %v623, %v642
        %v659 = vadd.f32 %v624, %v643
        %v660 = vadd.f32 %v625, %v644
        %v661 = vadd.f32 %v626, %v645
        %v662 = vadd.f32 %v627, %v646
        %v663 = vadd.f32 %v628, %v647
        %v664 = vadd.f32 %v629, %v648
        %v665 = vadd.f32 %v630, %v649
        %v666 = vadd.f32 %v631, %v650
        %v667 = vadd.f32 %v632, %v651
        %v668 = vadd.f32 %v633, %v652
        %v669 = vadd.f32 %v634, %v653
        %v670 = vadd.f32 %v635, %v654
        %v671 = vadd.f32 %v636, %v655
        %v672 = vadd.f32 %v637, %v656
        %v673 = vadd.f32 %v638, %v657
        %s674 = scalar_lea.vmem [#allocation8], 304
        %v675 = vld [vmem:[%s674] sm:$0xff]
        %v676 = vld [vmem:[%s674 + $0x8] sm:$0xff]
        %v677 = vmul.f32 %v437, %v675
        %v678 = vmul.f32 %v438, %v676
        %v679 = vmul.f32 %v439, %v675
        %v680 = vmul.f32 %v440, %v676
        %v681 = vmul.f32 %v441, %v675
        %v682 = vmul.f32 %v442, %v676
        %v683 = vmul.f32 %v443, %v675
        %v684 = vmul.f32 %v444, %v676
        %v685 = vmul.f32 %v445, %v675
        %v686 = vmul.f32 %v446, %v676
        %v687 = vmul.f32 %v447, %v675
        %v688 = vmul.f32 %v448, %v676
        %v689 = vmul.f32 %v449, %v675
        %v690 = vmul.f32 %v450, %v676
        %v691 = vmul.f32 %v451, %v675
        %v692 = vmul.f32 %v452, %v676
        %v693 = vadd.f32 %v658, %v677
        %v694 = vadd.f32 %v659, %v678
        %v695 = vadd.f32 %v660, %v679
        %v696 = vadd.f32 %v661, %v680
        %v697 = vadd.f32 %v662, %v681
        %v698 = vadd.f32 %v663, %v682
        %v699 = vadd.f32 %v664, %v683
        %v700 = vadd.f32 %v665, %v684
        %v701 = vadd.f32 %v666, %v685
        %v702 = vadd.f32 %v667, %v686
        %v703 = vadd.f32 %v668, %v687
        %v704 = vadd.f32 %v669, %v688
        %v705 = vadd.f32 %v670, %v689
        %v706 = vadd.f32 %v671, %v690
        %v707 = vadd.f32 %v672, %v691
        %v708 = vadd.f32 %v673, %v692
        %709 = vrot.lane.b32.xlu0 %v433, 96
        %v710 = vpop.permute.xlu0 %709
        %711 = vrot.lane.b32.xlu0 %v435, 96
        %v712 = vpop.permute.xlu0 %711
        %713 = vrot.lane.b32.xlu0 %v437, 96
        %v714 = vpop.permute.xlu0 %713
        %715 = vrot.lane.b32.xlu0 %v439, 96
        %v716 = vpop.permute.xlu0 %715
        %717 = vrot.lane.b32.xlu0 %v441, 96
        %v718 = vpop.permute.xlu0 %717
        %719 = vrot.lane.b32.xlu0 %v443, 96
        %v720 = vpop.permute.xlu0 %719
        %721 = vrot.lane.b32.xlu0 %v445, 96
        %v722 = vpop.permute.xlu0 %721
        %723 = vrot.lane.b32.xlu0 %v447, 96
        %v724 = vpop.permute.xlu0 %723
        %725 = vrot.lane.b32.xlu0 %v449, 96
        %v726 = vpop.permute.xlu0 %725
        %727 = vrot.lane.b32.xlu0 %v451, 96
        %v728 = vpop.permute.xlu0 %727
        %729 = vrot.lane.b32.xlu0 %v434, 96
        %v730 = vpop.permute.xlu0 %729
        %731 = vrot.lane.b32.xlu0 %v436, 96
        %v732 = vpop.permute.xlu0 %731
        %733 = vrot.lane.b32.xlu0 %v438, 96
        %v734 = vpop.permute.xlu0 %733
        %735 = vrot.lane.b32.xlu0 %v440, 96
        %v736 = vpop.permute.xlu0 %735
        %737 = vrot.lane.b32.xlu0 %v442, 96
        %v738 = vpop.permute.xlu0 %737
        %739 = vrot.lane.b32.xlu0 %v444, 96
        %v740 = vpop.permute.xlu0 %739
        %741 = vrot.lane.b32.xlu0 %v446, 96
        %v742 = vpop.permute.xlu0 %741
        %743 = vrot.lane.b32.xlu0 %v448, 96
        %v744 = vpop.permute.xlu0 %743
        %745 = vrot.lane.b32.xlu0 %v450, 96
        %v746 = vpop.permute.xlu0 %745
        %747 = vrot.lane.b32.xlu0 %v452, 96
        %v748 = vpop.permute.xlu0 %747
        %vm749 = vcmp.lt.s32.totalorder %v494, 96
        %v750 = vsel %vm749, %v710, %v730
        %v751 = vsel %vm749, %v712, %v732
        %v752 = vsel %vm749, %v714, %v734
        %v753 = vsel %vm749, %v716, %v736
        %v754 = vsel %vm749, %v718, %v738
        %v755 = vsel %vm749, %v720, %v740
        %v756 = vsel %vm749, %v722, %v742
        %v757 = vsel %vm749, %v724, %v744
        %v758 = vsel %vm749, %v726, %v746
        %v759 = vsel %vm749, %v728, %v748
        %v760 = vsel %vm749, %v730, %v710
        %v761 = vsel %vm749, %v732, %v712
        %v762 = vsel %vm749, %v734, %v714
        %v763 = vsel %vm749, %v736, %v716
        %v764 = vsel %vm749, %v738, %v718
        %v765 = vsel %vm749, %v740, %v720
        %v766 = vsel %vm749, %v742, %v722
        %v767 = vsel %vm749, %v744, %v724
        %v768 = vsel %vm749, %v746, %v726
        %v769 = vsel %vm749, %v748, %v728
        %s770 = scalar_lea.vmem [#allocation8], 32
        %v771 = vld [vmem:[%s770] sm:$0xff]
        %v772 = vld [vmem:[%s770 + $0x8] sm:$0xff]
        %v773 = vmul.f32 %v750, %v771
        %v774 = vmul.f32 %v760, %v772
        %v775 = vmul.f32 %v751, %v771
        %v776 = vmul.f32 %v761, %v772
        %v777 = vmul.f32 %v752, %v771
        %v778 = vmul.f32 %v762, %v772
        %v779 = vmul.f32 %v753, %v771
        %v780 = vmul.f32 %v763, %v772
        %v781 = vmul.f32 %v754, %v771
        %v782 = vmul.f32 %v764, %v772
        %v783 = vmul.f32 %v755, %v771
        %v784 = vmul.f32 %v765, %v772
        %v785 = vmul.f32 %v756, %v771
        %v786 = vmul.f32 %v766, %v772
        %v787 = vmul.f32 %v757, %v771
        %v788 = vmul.f32 %v767, %v772
        %v789 = vadd.f32 %v693, %v773
        %v790 = vadd.f32 %v694, %v774
        %v791 = vadd.f32 %v695, %v775
        %v792 = vadd.f32 %v696, %v776
        %v793 = vadd.f32 %v697, %v777
        %v794 = vadd.f32 %v698, %v778
        %v795 = vadd.f32 %v699, %v779
        %v796 = vadd.f32 %v700, %v780
        %v797 = vadd.f32 %v701, %v781
        %v798 = vadd.f32 %v702, %v782
        %v799 = vadd.f32 %v703, %v783
        %v800 = vadd.f32 %v704, %v784
        %v801 = vadd.f32 %v705, %v785
        %v802 = vadd.f32 %v706, %v786
        %v803 = vadd.f32 %v707, %v787
        %v804 = vadd.f32 %v708, %v788
        %s805 = scalar_lea.vmem [#allocation8], 176
        %v806 = vld [vmem:[%s805] sm:$0xff]
        %v807 = vld [vmem:[%s805 + $0x8] sm:$0xff]
        %v808 = vmul.f32 %v751, %v806
        %v809 = vmul.f32 %v761, %v807
        %v810 = vmul.f32 %v752, %v806
        %v811 = vmul.f32 %v762, %v807
        %v812 = vmul.f32 %v753, %v806
        %v813 = vmul.f32 %v763, %v807
        %v814 = vmul.f32 %v754, %v806
        %v815 = vmul.f32 %v764, %v807
        %v816 = vmul.f32 %v755, %v806
        %v817 = vmul.f32 %v765, %v807
        %v818 = vmul.f32 %v756, %v806
        %v819 = vmul.f32 %v766, %v807
        %v820 = vmul.f32 %v757, %v806
        %v821 = vmul.f32 %v767, %v807
        %v822 = vmul.f32 %v758, %v806
        %v823 = vmul.f32 %v768, %v807
        %v824 = vadd.f32 %v789, %v808
        %v825 = vadd.f32 %v790, %v809
        %v826 = vadd.f32 %v791, %v810
        %v827 = vadd.f32 %v792, %v811
        %v828 = vadd.f32 %v793, %v812
        %v829 = vadd.f32 %v794, %v813
        %v830 = vadd.f32 %v795, %v814
        %v831 = vadd.f32 %v796, %v815
        %v832 = vadd.f32 %v797, %v816
        %v833 = vadd.f32 %v798, %v817
        %v834 = vadd.f32 %v799, %v818
        %v835 = vadd.f32 %v800, %v819
        %v836 = vadd.f32 %v801, %v820
        %v837 = vadd.f32 %v802, %v821
        %v838 = vadd.f32 %v803, %v822
        %v839 = vadd.f32 %v804, %v823
        %s840 = scalar_lea.vmem [#allocation8], 320
        %v841 = vld [vmem:[%s840] sm:$0xff]
        %v842 = vld [vmem:[%s840 + $0x8] sm:$0xff]
        %v843 = vmul.f32 %v752, %v841
        %v844 = vmul.f32 %v762, %v842
        %v845 = vmul.f32 %v753, %v841
        %v846 = vmul.f32 %v763, %v842
        %v847 = vmul.f32 %v754, %v841
        %v848 = vmul.f32 %v764, %v842
        %v849 = vmul.f32 %v755, %v841
        %v850 = vmul.f32 %v765, %v842
        %v851 = vmul.f32 %v756, %v841
        %v852 = vmul.f32 %v766, %v842
        %v853 = vmul.f32 %v757, %v841
        %v854 = vmul.f32 %v767, %v842
        %v855 = vmul.f32 %v758, %v841
        %v856 = vmul.f32 %v768, %v842
        %v857 = vmul.f32 %v759, %v841
        %v858 = vmul.f32 %v769, %v842
        %v859 = vadd.f32 %v824, %v843
        %v860 = vadd.f32 %v825, %v844
        %v861 = vadd.f32 %v826, %v845
        %v862 = vadd.f32 %v827, %v846
        %v863 = vadd.f32 %v828, %v847
        %v864 = vadd.f32 %v829, %v848
        %v865 = vadd.f32 %v830, %v849
        %v866 = vadd.f32 %v831, %v850
        %v867 = vadd.f32 %v832, %v851
        %v868 = vadd.f32 %v833, %v852
        %v869 = vadd.f32 %v834, %v853
        %v870 = vadd.f32 %v835, %v854
        %v871 = vadd.f32 %v836, %v855
        %v872 = vadd.f32 %v837, %v856
        %v873 = vadd.f32 %v838, %v857
        %v874 = vadd.f32 %v839, %v858
        %875 = vrot.lane.b32.xlu0 %v422, 32
        %v876 = vpop.permute.xlu0 %875
        %877 = vrot.lane.b32.xlu0 %v400, 32
        %v878 = vpop.permute.xlu0 %877
        %879 = vrot.lane.b32.xlu0 %v402, 32
        %v880 = vpop.permute.xlu0 %879
        %881 = vrot.lane.b32.xlu0 %v404, 32
        %v882 = vpop.permute.xlu0 %881
        %883 = vrot.lane.b32.xlu0 %v406, 32
        %v884 = vpop.permute.xlu0 %883
        %885 = vrot.lane.b32.xlu0 %v408, 32
        %v886 = vpop.permute.xlu0 %885
        %887 = vrot.lane.b32.xlu0 %v410, 32
        %v888 = vpop.permute.xlu0 %887
        %889 = vrot.lane.b32.xlu0 %v412, 32
        %v890 = vpop.permute.xlu0 %889
        %891 = vrot.lane.b32.xlu0 %v414, 32
        %v892 = vpop.permute.xlu0 %891
        %893 = vrot.lane.b32.xlu0 %v430, 32
        %v894 = vpop.permute.xlu0 %893
        %895 = vrot.lane.b32.xlu0 %v423, 32
        %v896 = vpop.permute.xlu0 %895
        %897 = vrot.lane.b32.xlu0 %v401, 32
        %v898 = vpop.permute.xlu0 %897
        %899 = vrot.lane.b32.xlu0 %v403, 32
        %v900 = vpop.permute.xlu0 %899
        %901 = vrot.lane.b32.xlu0 %v405, 32
        %v902 = vpop.permute.xlu0 %901
        %903 = vrot.lane.b32.xlu0 %v407, 32
        %v904 = vpop.permute.xlu0 %903
        %905 = vrot.lane.b32.xlu0 %v409, 32
        %v906 = vpop.permute.xlu0 %905
        %907 = vrot.lane.b32.xlu0 %v411, 32
        %v908 = vpop.permute.xlu0 %907
        %909 = vrot.lane.b32.xlu0 %v413, 32
        %v910 = vpop.permute.xlu0 %909
        %911 = vrot.lane.b32.xlu0 %v415, 32
        %v912 = vpop.permute.xlu0 %911
        %913 = vrot.lane.b32.xlu0 %v431, 32
        %v914 = vpop.permute.xlu0 %913
        %v915 = vsel %vm495, %v876, %v896
        %v916 = vsel %vm495, %v878, %v898
        %v917 = vsel %vm495, %v880, %v900
        %v918 = vsel %vm495, %v882, %v902
        %v919 = vsel %vm495, %v884, %v904
        %v920 = vsel %vm495, %v886, %v906
        %v921 = vsel %vm495, %v888, %v908
        %v922 = vsel %vm495, %v890, %v910
        %v923 = vsel %vm495, %v892, %v912
        %v924 = vsel %vm495, %v894, %v914
        %v925 = vsel %vm495, %v896, %v876
        %v926 = vsel %vm495, %v898, %v878
        %v927 = vsel %vm495, %v900, %v880
        %v928 = vsel %vm495, %v902, %v882
        %v929 = vsel %vm495, %v904, %v884
        %v930 = vsel %vm495, %v906, %v886
        %v931 = vsel %vm495, %v908, %v888
        %v932 = vsel %vm495, %v910, %v890
        %v933 = vsel %vm495, %v912, %v892
        %v934 = vsel %vm495, %v914, %v894
        %s935 = scalar_lea.vmem [#allocation8], 48
        %v936 = vld [vmem:[%s935] sm:$0xff]
        %v937 = vld [vmem:[%s935 + $0x8] sm:$0xff]
        %v938 = vmul.f32 %v925, %v936
        %v939 = vmul.f32 %v915, %v937
        %v940 = vmul.f32 %v926, %v936
        %v941 = vmul.f32 %v916, %v937
        %v942 = vmul.f32 %v927, %v936
        %v943 = vmul.f32 %v917, %v937
        %v944 = vmul.f32 %v928, %v936
        %v945 = vmul.f32 %v918, %v937
        %v946 = vmul.f32 %v929, %v936
        %v947 = vmul.f32 %v919, %v937
        %v948 = vmul.f32 %v930, %v936
        %v949 = vmul.f32 %v920, %v937
        %v950 = vmul.f32 %v931, %v936
        %v951 = vmul.f32 %v921, %v937
        %v952 = vmul.f32 %v932, %v936
        %v953 = vmul.f32 %v922, %v937
        %s954 = scalar_lea.vmem [#allocation8], 192
        %v955 = vld [vmem:[%s954] sm:$0xff]
        %v956 = vld [vmem:[%s954 + $0x8] sm:$0xff]
        %v957 = vmul.f32 %v926, %v955
        %v958 = vmul.f32 %v916, %v956
        %v959 = vmul.f32 %v927, %v955
        %v960 = vmul.f32 %v917, %v956
        %v961 = vmul.f32 %v928, %v955
        %v962 = vmul.f32 %v918, %v956
        %v963 = vmul.f32 %v929, %v955
        %v964 = vmul.f32 %v919, %v956
        %v965 = vmul.f32 %v930, %v955
        %v966 = vmul.f32 %v920, %v956
        %v967 = vmul.f32 %v931, %v955
        %v968 = vmul.f32 %v921, %v956
        %v969 = vmul.f32 %v932, %v955
        %v970 = vmul.f32 %v922, %v956
        %v971 = vmul.f32 %v933, %v955
        %v972 = vmul.f32 %v923, %v956
        %v973 = vadd.f32 %v938, %v957
        %v974 = vadd.f32 %v939, %v958
        %v975 = vadd.f32 %v940, %v959
        %v976 = vadd.f32 %v941, %v960
        %v977 = vadd.f32 %v942, %v961
        %v978 = vadd.f32 %v943, %v962
        %v979 = vadd.f32 %v944, %v963
        %v980 = vadd.f32 %v945, %v964
        %v981 = vadd.f32 %v946, %v965
        %v982 = vadd.f32 %v947, %v966
        %v983 = vadd.f32 %v948, %v967
        %v984 = vadd.f32 %v949, %v968
        %v985 = vadd.f32 %v950, %v969
        %v986 = vadd.f32 %v951, %v970
        %v987 = vadd.f32 %v952, %v971
        %v988 = vadd.f32 %v953, %v972
        %s989 = scalar_lea.vmem [#allocation8], 336
        %v990 = vld [vmem:[%s989] sm:$0xff]
        %v991 = vld [vmem:[%s989 + $0x8] sm:$0xff]
        %v992 = vmul.f32 %v927, %v990
        %v993 = vmul.f32 %v917, %v991
        %v994 = vmul.f32 %v928, %v990
        %v995 = vmul.f32 %v918, %v991
        %v996 = vmul.f32 %v929, %v990
        %v997 = vmul.f32 %v919, %v991
        %v998 = vmul.f32 %v930, %v990
        %v999 = vmul.f32 %v920, %v991
        %v1000 = vmul.f32 %v931, %v990
        %v1001 = vmul.f32 %v921, %v991
        %v1002 = vmul.f32 %v932, %v990
        %v1003 = vmul.f32 %v922, %v991
        %v1004 = vmul.f32 %v933, %v990
        %v1005 = vmul.f32 %v923, %v991
        %v1006 = vmul.f32 %v934, %v990
        %v1007 = vmul.f32 %v924, %v991
        %v1008 = vadd.f32 %v973, %v992
        %v1009 = vadd.f32 %v974, %v993
        %v1010 = vadd.f32 %v975, %v994
        %v1011 = vadd.f32 %v976, %v995
        %v1012 = vadd.f32 %v977, %v996
        %v1013 = vadd.f32 %v978, %v997
        %v1014 = vadd.f32 %v979, %v998
        %v1015 = vadd.f32 %v980, %v999
        %v1016 = vadd.f32 %v981, %v1000
        %v1017 = vadd.f32 %v982, %v1001
        %v1018 = vadd.f32 %v983, %v1002
        %v1019 = vadd.f32 %v984, %v1003
        %v1020 = vadd.f32 %v985, %v1004
        %v1021 = vadd.f32 %v986, %v1005
        %v1022 = vadd.f32 %v987, %v1006
        %v1023 = vadd.f32 %v988, %v1007
        %s1024 = scalar_lea.vmem [#allocation8], 64
        %v1025 = vld [vmem:[%s1024] sm:$0xff]
        %v1026 = vld [vmem:[%s1024 + $0x8] sm:$0xff]
        %v1027 = vmul.f32 %v422, %v1025
        %v1028 = vmul.f32 %v423, %v1026
        %v1029 = vmul.f32 %v400, %v1025
        %v1030 = vmul.f32 %v401, %v1026
        %v1031 = vmul.f32 %v402, %v1025
        %v1032 = vmul.f32 %v403, %v1026
        %v1033 = vmul.f32 %v404, %v1025
        %v1034 = vmul.f32 %v405, %v1026
        %v1035 = vmul.f32 %v406, %v1025
        %v1036 = vmul.f32 %v407, %v1026
        %v1037 = vmul.f32 %v408, %v1025
        %v1038 = vmul.f32 %v409, %v1026
        %v1039 = vmul.f32 %v410, %v1025
        %v1040 = vmul.f32 %v411, %v1026
        %v1041 = vmul.f32 %v412, %v1025
        %v1042 = vmul.f32 %v413, %v1026
        %v1043 = vadd.f32 %v1008, %v1027
        %v1044 = vadd.f32 %v1009, %v1028
        %v1045 = vadd.f32 %v1010, %v1029
        %v1046 = vadd.f32 %v1011, %v1030
        %v1047 = vadd.f32 %v1012, %v1031
        %v1048 = vadd.f32 %v1013, %v1032
        %v1049 = vadd.f32 %v1014, %v1033
        %v1050 = vadd.f32 %v1015, %v1034
        %v1051 = vadd.f32 %v1016, %v1035
        %v1052 = vadd.f32 %v1017, %v1036
        %v1053 = vadd.f32 %v1018, %v1037
        %v1054 = vadd.f32 %v1019, %v1038
        %v1055 = vadd.f32 %v1020, %v1039
        %v1056 = vadd.f32 %v1021, %v1040
        %v1057 = vadd.f32 %v1022, %v1041
        %v1058 = vadd.f32 %v1023, %v1042
        %s1059 = scalar_lea.vmem [#allocation8], 208
        %v1060 = vld [vmem:[%s1059] sm:$0xff]
        %v1061 = vld [vmem:[%s1059 + $0x8] sm:$0xff]
        %v1062 = vmul.f32 %v400, %v1060
        %v1063 = vmul.f32 %v401, %v1061
        %v1064 = vmul.f32 %v402, %v1060
        %v1065 = vmul.f32 %v403, %v1061
        %v1066 = vmul.f32 %v404, %v1060
        %v1067 = vmul.f32 %v405, %v1061
        %v1068 = vmul.f32 %v406, %v1060
        %v1069 = vmul.f32 %v407, %v1061
        %v1070 = vmul.f32 %v408, %v1060
        %v1071 = vmul.f32 %v409, %v1061
        %v1072 = vmul.f32 %v410, %v1060
        %v1073 = vmul.f32 %v411, %v1061
        %v1074 = vmul.f32 %v412, %v1060
        %v1075 = vmul.f32 %v413, %v1061
        %v1076 = vmul.f32 %v414, %v1060
        %v1077 = vmul.f32 %v415, %v1061
        %v1078 = vadd.f32 %v1043, %v1062
        %v1079 = vadd.f32 %v1044, %v1063
        %v1080 = vadd.f32 %v1045, %v1064
        %v1081 = vadd.f32 %v1046, %v1065
        %v1082 = vadd.f32 %v1047, %v1066
        %v1083 = vadd.f32 %v1048, %v1067
        %v1084 = vadd.f32 %v1049, %v1068
        %v1085 = vadd.f32 %v1050, %v1069
        %v1086 = vadd.f32 %v1051, %v1070
        %v1087 = vadd.f32 %v1052, %v1071
        %v1088 = vadd.f32 %v1053, %v1072
        %v1089 = vadd.f32 %v1054, %v1073
        %v1090 = vadd.f32 %v1055, %v1074
        %v1091 = vadd.f32 %v1056, %v1075
        %v1092 = vadd.f32 %v1057, %v1076
        %v1093 = vadd.f32 %v1058, %v1077
        %s1094 = scalar_lea.vmem [#allocation8], 352
        %v1095 = vld [vmem:[%s1094] sm:$0xff]
        %v1096 = vld [vmem:[%s1094 + $0x8] sm:$0xff]
        %v1097 = vmul.f32 %v402, %v1095
        %v1098 = vmul.f32 %v403, %v1096
        %v1099 = vmul.f32 %v404, %v1095
        %v1100 = vmul.f32 %v405, %v1096
        %v1101 = vmul.f32 %v406, %v1095
        %v1102 = vmul.f32 %v407, %v1096
        %v1103 = vmul.f32 %v408, %v1095
        %v1104 = vmul.f32 %v409, %v1096
        %v1105 = vmul.f32 %v410, %v1095
        %v1106 = vmul.f32 %v411, %v1096
        %v1107 = vmul.f32 %v412, %v1095
        %v1108 = vmul.f32 %v413, %v1096
        %v1109 = vmul.f32 %v414, %v1095
        %v1110 = vmul.f32 %v415, %v1096
        %v1111 = vmul.f32 %v430, %v1095
        %v1112 = vmul.f32 %v431, %v1096
        %v1113 = vadd.f32 %v1078, %v1097
        %v1114 = vadd.f32 %v1079, %v1098
        %v1115 = vadd.f32 %v1080, %v1099
        %v1116 = vadd.f32 %v1081, %v1100
        %v1117 = vadd.f32 %v1082, %v1101
        %v1118 = vadd.f32 %v1083, %v1102
        %v1119 = vadd.f32 %v1084, %v1103
        %v1120 = vadd.f32 %v1085, %v1104
        %v1121 = vadd.f32 %v1086, %v1105
        %v1122 = vadd.f32 %v1087, %v1106
        %v1123 = vadd.f32 %v1088, %v1107
        %v1124 = vadd.f32 %v1089, %v1108
        %v1125 = vadd.f32 %v1090, %v1109
        %v1126 = vadd.f32 %v1091, %v1110
        %v1127 = vadd.f32 %v1092, %v1111
        %v1128 = vadd.f32 %v1093, %v1112
        %1129 = vrot.lane.b32.xlu0 %v422, 96
        %v1130 = vpop.permute.xlu0 %1129
        %1131 = vrot.lane.b32.xlu0 %v400, 96
        %v1132 = vpop.permute.xlu0 %1131
        %1133 = vrot.lane.b32.xlu0 %v402, 96
        %v1134 = vpop.permute.xlu0 %1133
        %1135 = vrot.lane.b32.xlu0 %v404, 96
        %v1136 = vpop.permute.xlu0 %1135
        %1137 = vrot.lane.b32.xlu0 %v406, 96
        %v1138 = vpop.permute.xlu0 %1137
        %1139 = vrot.lane.b32.xlu0 %v408, 96
        %v1140 = vpop.permute.xlu0 %1139
        %1141 = vrot.lane.b32.xlu0 %v410, 96
        %v1142 = vpop.permute.xlu0 %1141
        %1143 = vrot.lane.b32.xlu0 %v412, 96
        %v1144 = vpop.permute.xlu0 %1143
        %1145 = vrot.lane.b32.xlu0 %v414, 96
        %v1146 = vpop.permute.xlu0 %1145
        %1147 = vrot.lane.b32.xlu0 %v430, 96
        %v1148 = vpop.permute.xlu0 %1147
        %1149 = vrot.lane.b32.xlu0 %v423, 96
        %v1150 = vpop.permute.xlu0 %1149
        %1151 = vrot.lane.b32.xlu0 %v401, 96
        %v1152 = vpop.permute.xlu0 %1151
        %1153 = vrot.lane.b32.xlu0 %v403, 96
        %v1154 = vpop.permute.xlu0 %1153
        %1155 = vrot.lane.b32.xlu0 %v405, 96
        %v1156 = vpop.permute.xlu0 %1155
        %1157 = vrot.lane.b32.xlu0 %v407, 96
        %v1158 = vpop.permute.xlu0 %1157
        %1159 = vrot.lane.b32.xlu0 %v409, 96
        %v1160 = vpop.permute.xlu0 %1159
        %1161 = vrot.lane.b32.xlu0 %v411, 96
        %v1162 = vpop.permute.xlu0 %1161
        %1163 = vrot.lane.b32.xlu0 %v413, 96
        %v1164 = vpop.permute.xlu0 %1163
        %1165 = vrot.lane.b32.xlu0 %v415, 96
        %v1166 = vpop.permute.xlu0 %1165
        %1167 = vrot.lane.b32.xlu0 %v431, 96
        %v1168 = vpop.permute.xlu0 %1167
        %v1169 = vsel %vm749, %v1130, %v1150
        %v1170 = vsel %vm749, %v1132, %v1152
        %v1171 = vsel %vm749, %v1134, %v1154
        %v1172 = vsel %vm749, %v1136, %v1156
        %v1173 = vsel %vm749, %v1138, %v1158
        %v1174 = vsel %vm749, %v1140, %v1160
        %v1175 = vsel %vm749, %v1142, %v1162
        %v1176 = vsel %vm749, %v1144, %v1164
        %v1177 = vsel %vm749, %v1146, %v1166
        %v1178 = vsel %vm749, %v1148, %v1168
        %v1179 = vsel %vm749, %v1150, %v1130
        %v1180 = vsel %vm749, %v1152, %v1132
        %v1181 = vsel %vm749, %v1154, %v1134
        %v1182 = vsel %vm749, %v1156, %v1136
        %v1183 = vsel %vm749, %v1158, %v1138
        %v1184 = vsel %vm749, %v1160, %v1140
        %v1185 = vsel %vm749, %v1162, %v1142
        %v1186 = vsel %vm749, %v1164, %v1144
        %v1187 = vsel %vm749, %v1166, %v1146
        %v1188 = vsel %vm749, %v1168, %v1148
        %s1189 = scalar_lea.vmem [#allocation8], 80
        %v1190 = vld [vmem:[%s1189] sm:$0xff]
        %v1191 = vld [vmem:[%s1189 + $0x8] sm:$0xff]
        %v1192 = vmul.f32 %v1169, %v1190
        %v1193 = vmul.f32 %v1179, %v1191
        %v1194 = vmul.f32 %v1170, %v1190
        %v1195 = vmul.f32 %v1180, %v1191
        %v1196 = vmul.f32 %v1171, %v1190
        %v1197 = vmul.f32 %v1181, %v1191
        %v1198 = vmul.f32 %v1172, %v1190
        %v1199 = vmul.f32 %v1182, %v1191
        %v1200 = vmul.f32 %v1173, %v1190
        %v1201 = vmul.f32 %v1183, %v1191
        %v1202 = vmul.f32 %v1174, %v1190
        %v1203 = vmul.f32 %v1184, %v1191
        %v1204 = vmul.f32 %v1175, %v1190
        %v1205 = vmul.f32 %v1185, %v1191
        %v1206 = vmul.f32 %v1176, %v1190
        %v1207 = vmul.f32 %v1186, %v1191
        %v1208 = vadd.f32 %v1113, %v1192
        %v1209 = vadd.f32 %v1114, %v1193
        %v1210 = vadd.f32 %v1115, %v1194
        %v1211 = vadd.f32 %v1116, %v1195
        %v1212 = vadd.f32 %v1117, %v1196
        %v1213 = vadd.f32 %v1118, %v1197
        %v1214 = vadd.f32 %v1119, %v1198
        %v1215 = vadd.f32 %v1120, %v1199
        %v1216 = vadd.f32 %v1121, %v1200
        %v1217 = vadd.f32 %v1122, %v1201
        %v1218 = vadd.f32 %v1123, %v1202
        %v1219 = vadd.f32 %v1124, %v1203
        %v1220 = vadd.f32 %v1125, %v1204
        %v1221 = vadd.f32 %v1126, %v1205
        %v1222 = vadd.f32 %v1127, %v1206
        %v1223 = vadd.f32 %v1128, %v1207
        %s1224 = scalar_lea.vmem [#allocation8], 224
        %v1225 = vld [vmem:[%s1224] sm:$0xff]
        %v1226 = vld [vmem:[%s1224 + $0x8] sm:$0xff]
        %v1227 = vmul.f32 %v1170, %v1225
        %v1228 = vmul.f32 %v1180, %v1226
        %v1229 = vmul.f32 %v1171, %v1225
        %v1230 = vmul.f32 %v1181, %v1226
        %v1231 = vmul.f32 %v1172, %v1225
        %v1232 = vmul.f32 %v1182, %v1226
        %v1233 = vmul.f32 %v1173, %v1225
        %v1234 = vmul.f32 %v1183, %v1226
        %v1235 = vmul.f32 %v1174, %v1225
        %v1236 = vmul.f32 %v1184, %v1226
        %v1237 = vmul.f32 %v1175, %v1225
        %v1238 = vmul.f32 %v1185, %v1226
        %v1239 = vmul.f32 %v1176, %v1225
        %v1240 = vmul.f32 %v1186, %v1226
        %v1241 = vmul.f32 %v1177, %v1225
        %v1242 = vmul.f32 %v1187, %v1226
        %v1243 = vadd.f32 %v1208, %v1227
        %v1244 = vadd.f32 %v1209, %v1228
        %v1245 = vadd.f32 %v1210, %v1229
        %v1246 = vadd.f32 %v1211, %v1230
        %v1247 = vadd.f32 %v1212, %v1231
        %v1248 = vadd.f32 %v1213, %v1232
        %v1249 = vadd.f32 %v1214, %v1233
        %v1250 = vadd.f32 %v1215, %v1234
        %v1251 = vadd.f32 %v1216, %v1235
        %v1252 = vadd.f32 %v1217, %v1236
        %v1253 = vadd.f32 %v1218, %v1237
        %v1254 = vadd.f32 %v1219, %v1238
        %v1255 = vadd.f32 %v1220, %v1239
        %v1256 = vadd.f32 %v1221, %v1240
        %v1257 = vadd.f32 %v1222, %v1241
        %v1258 = vadd.f32 %v1223, %v1242
        %s1259 = scalar_lea.vmem [#allocation8], 368
        %v1260 = vld [vmem:[%s1259] sm:$0xff]
        %v1261 = vld [vmem:[%s1259 + $0x8] sm:$0xff]
        %v1262 = vmul.f32 %v1171, %v1260
        %v1263 = vmul.f32 %v1181, %v1261
        %v1264 = vmul.f32 %v1172, %v1260
        %v1265 = vmul.f32 %v1182, %v1261
        %v1266 = vmul.f32 %v1173, %v1260
        %v1267 = vmul.f32 %v1183, %v1261
        %v1268 = vmul.f32 %v1174, %v1260
        %v1269 = vmul.f32 %v1184, %v1261
        %v1270 = vmul.f32 %v1175, %v1260
        %v1271 = vmul.f32 %v1185, %v1261
        %v1272 = vmul.f32 %v1176, %v1260
        %v1273 = vmul.f32 %v1186, %v1261
        %v1274 = vmul.f32 %v1177, %v1260
        %v1275 = vmul.f32 %v1187, %v1261
        %v1276 = vmul.f32 %v1178, %v1260
        %v1277 = vmul.f32 %v1188, %v1261
        %v1278 = vadd.f32 %v1243, %v1262
        %v1279 = vadd.f32 %v1244, %v1263
        %v1280 = vadd.f32 %v1245, %v1264
        %v1281 = vadd.f32 %v1246, %v1265
        %v1282 = vadd.f32 %v1247, %v1266
        %v1283 = vadd.f32 %v1248, %v1267
        %v1284 = vadd.f32 %v1249, %v1268
        %v1285 = vadd.f32 %v1250, %v1269
        %v1286 = vadd.f32 %v1251, %v1270
        %v1287 = vadd.f32 %v1252, %v1271
        %v1288 = vadd.f32 %v1253, %v1272
        %v1289 = vadd.f32 %v1254, %v1273
        %v1290 = vadd.f32 %v1255, %v1274
        %v1291 = vadd.f32 %v1256, %v1275
        %v1292 = vadd.f32 %v1257, %v1276
        %v1293 = vadd.f32 %v1258, %v1277
        %v1294 = vrot.slane %v422, 1
        %v1295 = vrot.slane %v423, 1
        %v1296 = vrot.slane %v400, 1
        %v1297 = vrot.slane %v401, 1
        %v1298 = vrot.slane %v402, 1
        %v1299 = vrot.slane %v403, 1
        %v1300 = vrot.slane %v404, 1
        %v1301 = vrot.slane %v405, 1
        %v1302 = vrot.slane %v406, 1
        %v1303 = vrot.slane %v407, 1
        %v1304 = vrot.slane %v408, 1
        %v1305 = vrot.slane %v409, 1
        %v1306 = vrot.slane %v410, 1
        %v1307 = vrot.slane %v411, 1
        %v1308 = vrot.slane %v412, 1
        %v1309 = vrot.slane %v413, 1
        %v1310 = vrot.slane %v414, 1
        %v1311 = vrot.slane %v415, 1
        %v1312 = vrot.slane %v430, 1
        %v1313 = vrot.slane %v431, 1
        %1314 = vrot.lane.b32.xlu0 %v1294, 32
        %v1315 = vpop.permute.xlu0 %1314
        %1316 = vrot.lane.b32.xlu0 %v1296, 32
        %v1317 = vpop.permute.xlu0 %1316
        %1318 = vrot.lane.b32.xlu0 %v1298, 32
        %v1319 = vpop.permute.xlu0 %1318
        %1320 = vrot.lane.b32.xlu0 %v1300, 32
        %v1321 = vpop.permute.xlu0 %1320
        %1322 = vrot.lane.b32.xlu0 %v1302, 32
        %v1323 = vpop.permute.xlu0 %1322
        %1324 = vrot.lane.b32.xlu0 %v1304, 32
        %v1325 = vpop.permute.xlu0 %1324
        %1326 = vrot.lane.b32.xlu0 %v1306, 32
        %v1327 = vpop.permute.xlu0 %1326
        %1328 = vrot.lane.b32.xlu0 %v1308, 32
        %v1329 = vpop.permute.xlu0 %1328
        %1330 = vrot.lane.b32.xlu0 %v1310, 32
        %v1331 = vpop.permute.xlu0 %1330
        %1332 = vrot.lane.b32.xlu0 %v1312, 32
        %v1333 = vpop.permute.xlu0 %1332
        %1334 = vrot.lane.b32.xlu0 %v1295, 32
        %v1335 = vpop.permute.xlu0 %1334
        %1336 = vrot.lane.b32.xlu0 %v1297, 32
        %v1337 = vpop.permute.xlu0 %1336
        %1338 = vrot.lane.b32.xlu0 %v1299, 32
        %v1339 = vpop.permute.xlu0 %1338
        %1340 = vrot.lane.b32.xlu0 %v1301, 32
        %v1341 = vpop.permute.xlu0 %1340
        %1342 = vrot.lane.b32.xlu0 %v1303, 32
        %v1343 = vpop.permute.xlu0 %1342
        %1344 = vrot.lane.b32.xlu0 %v1305, 32
        %v1345 = vpop.permute.xlu0 %1344
        %1346 = vrot.lane.b32.xlu0 %v1307, 32
        %v1347 = vpop.permute.xlu0 %1346
        %1348 = vrot.lane.b32.xlu0 %v1309, 32
        %v1349 = vpop.permute.xlu0 %1348
        %1350 = vrot.lane.b32.xlu0 %v1311, 32
        %v1351 = vpop.permute.xlu0 %1350
        %1352 = vrot.lane.b32.xlu0 %v1313, 32
        %v1353 = vpop.permute.xlu0 %1352
        %v1354 = vsel %vm495, %v1315, %v1335
        %v1355 = vsel %vm495, %v1317, %v1337
        %v1356 = vsel %vm495, %v1319, %v1339
        %v1357 = vsel %vm495, %v1321, %v1341
        %v1358 = vsel %vm495, %v1323, %v1343
        %v1359 = vsel %vm495, %v1325, %v1345
        %v1360 = vsel %vm495, %v1327, %v1347
        %v1361 = vsel %vm495, %v1329, %v1349
        %v1362 = vsel %vm495, %v1331, %v1351
        %v1363 = vsel %vm495, %v1333, %v1353
        %v1364 = vsel %vm495, %v1335, %v1315
        %v1365 = vsel %vm495, %v1337, %v1317
        %v1366 = vsel %vm495, %v1339, %v1319
        %v1367 = vsel %vm495, %v1341, %v1321
        %v1368 = vsel %vm495, %v1343, %v1323
        %v1369 = vsel %vm495, %v1345, %v1325
        %v1370 = vsel %vm495, %v1347, %v1327
        %v1371 = vsel %vm495, %v1349, %v1329
        %v1372 = vsel %vm495, %v1351, %v1331
        %v1373 = vsel %vm495, %v1353, %v1333
        %s1374 = scalar_lea.vmem [#allocation8], 96
        %v1375 = vld [vmem:[%s1374] sm:$0xff]
        %v1376 = vld [vmem:[%s1374 + $0x8] sm:$0xff]
        %v1377 = vmul.f32 %v1364, %v1375
        %v1378 = vmul.f32 %v1354, %v1376
        %v1379 = vmul.f32 %v1365, %v1375
        %v1380 = vmul.f32 %v1355, %v1376
        %v1381 = vmul.f32 %v1366, %v1375
        %v1382 = vmul.f32 %v1356, %v1376
        %v1383 = vmul.f32 %v1367, %v1375
        %v1384 = vmul.f32 %v1357, %v1376
        %v1385 = vmul.f32 %v1368, %v1375
        %v1386 = vmul.f32 %v1358, %v1376
        %v1387 = vmul.f32 %v1369, %v1375
        %v1388 = vmul.f32 %v1359, %v1376
        %v1389 = vmul.f32 %v1370, %v1375
        %v1390 = vmul.f32 %v1360, %v1376
        %v1391 = vmul.f32 %v1371, %v1375
        %v1392 = vmul.f32 %v1361, %v1376
        %s1393 = scalar_lea.vmem [#allocation8], 240
        %v1394 = vld [vmem:[%s1393] sm:$0xff]
        %v1395 = vld [vmem:[%s1393 + $0x8] sm:$0xff]
        %v1396 = vmul.f32 %v1365, %v1394
        %v1397 = vmul.f32 %v1355, %v1395
        %v1398 = vmul.f32 %v1366, %v1394
        %v1399 = vmul.f32 %v1356, %v1395
        %v1400 = vmul.f32 %v1367, %v1394
        %v1401 = vmul.f32 %v1357, %v1395
        %v1402 = vmul.f32 %v1368, %v1394
        %v1403 = vmul.f32 %v1358, %v1395
        %v1404 = vmul.f32 %v1369, %v1394
        %v1405 = vmul.f32 %v1359, %v1395
        %v1406 = vmul.f32 %v1370, %v1394
        %v1407 = vmul.f32 %v1360, %v1395
        %v1408 = vmul.f32 %v1371, %v1394
        %v1409 = vmul.f32 %v1361, %v1395
        %v1410 = vmul.f32 %v1372, %v1394
        %v1411 = vmul.f32 %v1362, %v1395
        %v1412 = vadd.f32 %v1377, %v1396
        %v1413 = vadd.f32 %v1378, %v1397
        %v1414 = vadd.f32 %v1379, %v1398
        %v1415 = vadd.f32 %v1380, %v1399
        %v1416 = vadd.f32 %v1381, %v1400
        %v1417 = vadd.f32 %v1382, %v1401
        %v1418 = vadd.f32 %v1383, %v1402
        %v1419 = vadd.f32 %v1384, %v1403
        %v1420 = vadd.f32 %v1385, %v1404
        %v1421 = vadd.f32 %v1386, %v1405
        %v1422 = vadd.f32 %v1387, %v1406
        %v1423 = vadd.f32 %v1388, %v1407
        %v1424 = vadd.f32 %v1389, %v1408
        %v1425 = vadd.f32 %v1390, %v1409
        %v1426 = vadd.f32 %v1391, %v1410
        %v1427 = vadd.f32 %v1392, %v1411
        %s1428 = scalar_lea.vmem [#allocation8], 384
        %v1429 = vld [vmem:[%s1428] sm:$0xff]
        %v1430 = vld [vmem:[%s1428 + $0x8] sm:$0xff]
        %v1431 = vmul.f32 %v1366, %v1429
        %v1432 = vmul.f32 %v1356, %v1430
        %v1433 = vmul.f32 %v1367, %v1429
        %v1434 = vmul.f32 %v1357, %v1430
        %v1435 = vmul.f32 %v1368, %v1429
        %v1436 = vmul.f32 %v1358, %v1430
        %v1437 = vmul.f32 %v1369, %v1429
        %v1438 = vmul.f32 %v1359, %v1430
        %v1439 = vmul.f32 %v1370, %v1429
        %v1440 = vmul.f32 %v1360, %v1430
        %v1441 = vmul.f32 %v1371, %v1429
        %v1442 = vmul.f32 %v1361, %v1430
        %v1443 = vmul.f32 %v1372, %v1429
        %v1444 = vmul.f32 %v1362, %v1430
        %v1445 = vmul.f32 %v1373, %v1429
        %v1446 = vmul.f32 %v1363, %v1430
        %v1447 = vadd.f32 %v1412, %v1431
        %v1448 = vadd.f32 %v1413, %v1432
        %v1449 = vadd.f32 %v1414, %v1433
        %v1450 = vadd.f32 %v1415, %v1434
        %v1451 = vadd.f32 %v1416, %v1435
        %v1452 = vadd.f32 %v1417, %v1436
        %v1453 = vadd.f32 %v1418, %v1437
        %v1454 = vadd.f32 %v1419, %v1438
        %v1455 = vadd.f32 %v1420, %v1439
        %v1456 = vadd.f32 %v1421, %v1440
        %v1457 = vadd.f32 %v1422, %v1441
        %v1458 = vadd.f32 %v1423, %v1442
        %v1459 = vadd.f32 %v1424, %v1443
        %v1460 = vadd.f32 %v1425, %v1444
        %v1461 = vadd.f32 %v1426, %v1445
        %v1462 = vadd.f32 %v1427, %v1446
        %s1463 = scalar_lea.vmem [#allocation8], 112
        %v1464 = vld [vmem:[%s1463] sm:$0xff]
        %v1465 = vld [vmem:[%s1463 + $0x8] sm:$0xff]
        %v1466 = vmul.f32 %v1294, %v1464
        %v1467 = vmul.f32 %v1295, %v1465
        %v1468 = vmul.f32 %v1296, %v1464
        %v1469 = vmul.f32 %v1297, %v1465
        %v1470 = vmul.f32 %v1298, %v1464
        %v1471 = vmul.f32 %v1299, %v1465
        %v1472 = vmul.f32 %v1300, %v1464
        %v1473 = vmul.f32 %v1301, %v1465
        %v1474 = vmul.f32 %v1302, %v1464
        %v1475 = vmul.f32 %v1303, %v1465
        %v1476 = vmul.f32 %v1304, %v1464
        %v1477 = vmul.f32 %v1305, %v1465
        %v1478 = vmul.f32 %v1306, %v1464
        %v1479 = vmul.f32 %v1307, %v1465
        %v1480 = vmul.f32 %v1308, %v1464
        %v1481 = vmul.f32 %v1309, %v1465
        %v1482 = vadd.f32 %v1447, %v1466
        %v1483 = vadd.f32 %v1448, %v1467
        %v1484 = vadd.f32 %v1449, %v1468
        %v1485 = vadd.f32 %v1450, %v1469
        %v1486 = vadd.f32 %v1451, %v1470
        %v1487 = vadd.f32 %v1452, %v1471
        %v1488 = vadd.f32 %v1453, %v1472
        %v1489 = vadd.f32 %v1454, %v1473
        %v1490 = vadd.f32 %v1455, %v1474
        %v1491 = vadd.f32 %v1456, %v1475
        %v1492 = vadd.f32 %v1457, %v1476
        %v1493 = vadd.f32 %v1458, %v1477
        %v1494 = vadd.f32 %v1459, %v1478
        %v1495 = vadd.f32 %v1460, %v1479
        %v1496 = vadd.f32 %v1461, %v1480
        %v1497 = vadd.f32 %v1462, %v1481
        %s1498 = scalar_lea.vmem [#allocation8], 256
        %v1499 = vld [vmem:[%s1498] sm:$0xff]
        %v1500 = vld [vmem:[%s1498 + $0x8] sm:$0xff]
        %v1501 = vmul.f32 %v1296, %v1499
        %v1502 = vmul.f32 %v1297, %v1500
        %v1503 = vmul.f32 %v1298, %v1499
        %v1504 = vmul.f32 %v1299, %v1500
        %v1505 = vmul.f32 %v1300, %v1499
        %v1506 = vmul.f32 %v1301, %v1500
        %v1507 = vmul.f32 %v1302, %v1499
        %v1508 = vmul.f32 %v1303, %v1500
        %v1509 = vmul.f32 %v1304, %v1499
        %v1510 = vmul.f32 %v1305, %v1500
        %v1511 = vmul.f32 %v1306, %v1499
        %v1512 = vmul.f32 %v1307, %v1500
        %v1513 = vmul.f32 %v1308, %v1499
        %v1514 = vmul.f32 %v1309, %v1500
        %v1515 = vmul.f32 %v1310, %v1499
        %v1516 = vmul.f32 %v1311, %v1500
        %v1517 = vadd.f32 %v1482, %v1501
        %v1518 = vadd.f32 %v1483, %v1502
        %v1519 = vadd.f32 %v1484, %v1503
        %v1520 = vadd.f32 %v1485, %v1504
        %v1521 = vadd.f32 %v1486, %v1505
        %v1522 = vadd.f32 %v1487, %v1506
        %v1523 = vadd.f32 %v1488, %v1507
        %v1524 = vadd.f32 %v1489, %v1508
        %v1525 = vadd.f32 %v1490, %v1509
        %v1526 = vadd.f32 %v1491, %v1510
        %v1527 = vadd.f32 %v1492, %v1511
        %v1528 = vadd.f32 %v1493, %v1512
        %v1529 = vadd.f32 %v1494, %v1513
        %v1530 = vadd.f32 %v1495, %v1514
        %v1531 = vadd.f32 %v1496, %v1515
        %v1532 = vadd.f32 %v1497, %v1516
        %s1533 = scalar_lea.vmem [#allocation8], 400
        %v1534 = vld [vmem:[%s1533] sm:$0xff]
        %v1535 = vld [vmem:[%s1533 + $0x8] sm:$0xff]
        %v1536 = vmul.f32 %v1298, %v1534
        %v1537 = vmul.f32 %v1299, %v1535
        %v1538 = vmul.f32 %v1300, %v1534
        %v1539 = vmul.f32 %v1301, %v1535
        %v1540 = vmul.f32 %v1302, %v1534
        %v1541 = vmul.f32 %v1303, %v1535
        %v1542 = vmul.f32 %v1304, %v1534
        %v1543 = vmul.f32 %v1305, %v1535
        %v1544 = vmul.f32 %v1306, %v1534
        %v1545 = vmul.f32 %v1307, %v1535
        %v1546 = vmul.f32 %v1308, %v1534
        %v1547 = vmul.f32 %v1309, %v1535
        %v1548 = vmul.f32 %v1310, %v1534
        %v1549 = vmul.f32 %v1311, %v1535
        %v1550 = vmul.f32 %v1312, %v1534
        %v1551 = vmul.f32 %v1313, %v1535
        %v1552 = vadd.f32 %v1517, %v1536
        %v1553 = vadd.f32 %v1518, %v1537
        %v1554 = vadd.f32 %v1519, %v1538
        %v1555 = vadd.f32 %v1520, %v1539
        %v1556 = vadd.f32 %v1521, %v1540
        %v1557 = vadd.f32 %v1522, %v1541
        %v1558 = vadd.f32 %v1523, %v1542
        %v1559 = vadd.f32 %v1524, %v1543
        %v1560 = vadd.f32 %v1525, %v1544
        %v1561 = vadd.f32 %v1526, %v1545
        %v1562 = vadd.f32 %v1527, %v1546
        %v1563 = vadd.f32 %v1528, %v1547
        %v1564 = vadd.f32 %v1529, %v1548
        %v1565 = vadd.f32 %v1530, %v1549
        %v1566 = vadd.f32 %v1531, %v1550
        %v1567 = vadd.f32 %v1532, %v1551
        %1568 = vrot.lane.b32.xlu0 %v1294, 96
        %v1569 = vpop.permute.xlu0 %1568
        %1570 = vrot.lane.b32.xlu0 %v1296, 96
        %v1571 = vpop.permute.xlu0 %1570
        %1572 = vrot.lane.b32.xlu0 %v1298, 96
        %v1573 = vpop.permute.xlu0 %1572
        %1574 = vrot.lane.b32.xlu0 %v1300, 96
        %v1575 = vpop.permute.xlu0 %1574
        %1576 = vrot.lane.b32.xlu0 %v1302, 96
        %v1577 = vpop.permute.xlu0 %1576
        %1578 = vrot.lane.b32.xlu0 %v1304, 96
        %v1579 = vpop.permute.xlu0 %1578
        %1580 = vrot.lane.b32.xlu0 %v1306, 96
        %v1581 = vpop.permute.xlu0 %1580
        %1582 = vrot.lane.b32.xlu0 %v1308, 96
        %v1583 = vpop.permute.xlu0 %1582
        %1584 = vrot.lane.b32.xlu0 %v1310, 96
        %v1585 = vpop.permute.xlu0 %1584
        %1586 = vrot.lane.b32.xlu0 %v1312, 96
        %v1587 = vpop.permute.xlu0 %1586
        %1588 = vrot.lane.b32.xlu0 %v1295, 96
        %v1589 = vpop.permute.xlu0 %1588
        %1590 = vrot.lane.b32.xlu0 %v1297, 96
        %v1591 = vpop.permute.xlu0 %1590
        %1592 = vrot.lane.b32.xlu0 %v1299, 96
        %v1593 = vpop.permute.xlu0 %1592
        %1594 = vrot.lane.b32.xlu0 %v1301, 96
        %v1595 = vpop.permute.xlu0 %1594
        %1596 = vrot.lane.b32.xlu0 %v1303, 96
        %v1597 = vpop.permute.xlu0 %1596
        %1598 = vrot.lane.b32.xlu0 %v1305, 96
        %v1599 = vpop.permute.xlu0 %1598
        %1600 = vrot.lane.b32.xlu0 %v1307, 96
        %v1601 = vpop.permute.xlu0 %1600
        %1602 = vrot.lane.b32.xlu0 %v1309, 96
        %v1603 = vpop.permute.xlu0 %1602
        %1604 = vrot.lane.b32.xlu0 %v1311, 96
        %v1605 = vpop.permute.xlu0 %1604
        %1606 = vrot.lane.b32.xlu0 %v1313, 96
        %v1607 = vpop.permute.xlu0 %1606
        %v1608 = vsel %vm749, %v1569, %v1589
        %v1609 = vsel %vm749, %v1571, %v1591
        %v1610 = vsel %vm749, %v1573, %v1593
        %v1611 = vsel %vm749, %v1575, %v1595
        %v1612 = vsel %vm749, %v1577, %v1597
        %v1613 = vsel %vm749, %v1579, %v1599
        %v1614 = vsel %vm749, %v1581, %v1601
        %v1615 = vsel %vm749, %v1583, %v1603
        %v1616 = vsel %vm749, %v1585, %v1605
        %v1617 = vsel %vm749, %v1587, %v1607
        %v1618 = vsel %vm749, %v1589, %v1569
        %v1619 = vsel %vm749, %v1591, %v1571
        %v1620 = vsel %vm749, %v1593, %v1573
        %v1621 = vsel %vm749, %v1595, %v1575
        %v1622 = vsel %vm749, %v1597, %v1577
        %v1623 = vsel %vm749, %v1599, %v1579
        %v1624 = vsel %vm749, %v1601, %v1581
        %v1625 = vsel %vm749, %v1603, %v1583
        %v1626 = vsel %vm749, %v1605, %v1585
        %v1627 = vsel %vm749, %v1607, %v1587
        %s1628 = scalar_lea.vmem [#allocation8], 128
        %v1629 = vld [vmem:[%s1628] sm:$0xff]
        %v1630 = vld [vmem:[%s1628 + $0x8] sm:$0xff]
        %v1631 = vmul.f32 %v1608, %v1629
        %v1632 = vmul.f32 %v1618, %v1630
        %v1633 = vmul.f32 %v1609, %v1629
        %v1634 = vmul.f32 %v1619, %v1630
        %v1635 = vmul.f32 %v1610, %v1629
        %v1636 = vmul.f32 %v1620, %v1630
        %v1637 = vmul.f32 %v1611, %v1629
        %v1638 = vmul.f32 %v1621, %v1630
        %v1639 = vmul.f32 %v1612, %v1629
        %v1640 = vmul.f32 %v1622, %v1630
        %v1641 = vmul.f32 %v1613, %v1629
        %v1642 = vmul.f32 %v1623, %v1630
        %v1643 = vmul.f32 %v1614, %v1629
        %v1644 = vmul.f32 %v1624, %v1630
        %v1645 = vmul.f32 %v1615, %v1629
        %v1646 = vmul.f32 %v1625, %v1630
        %v1647 = vadd.f32 %v1552, %v1631
        %v1648 = vadd.f32 %v1553, %v1632
        %v1649 = vadd.f32 %v1554, %v1633
        %v1650 = vadd.f32 %v1555, %v1634
        %v1651 = vadd.f32 %v1556, %v1635
        %v1652 = vadd.f32 %v1557, %v1636
        %v1653 = vadd.f32 %v1558, %v1637
        %v1654 = vadd.f32 %v1559, %v1638
        %v1655 = vadd.f32 %v1560, %v1639
        %v1656 = vadd.f32 %v1561, %v1640
        %v1657 = vadd.f32 %v1562, %v1641
        %v1658 = vadd.f32 %v1563, %v1642
        %v1659 = vadd.f32 %v1564, %v1643
        %v1660 = vadd.f32 %v1565, %v1644
        %v1661 = vadd.f32 %v1566, %v1645
        %v1662 = vadd.f32 %v1567, %v1646
        %s1663 = scalar_lea.vmem [#allocation8], 272
        %v1664 = vld [vmem:[%s1663] sm:$0xff]
        %v1665 = vld [vmem:[%s1663 + $0x8] sm:$0xff]
        %v1666 = vmul.f32 %v1609, %v1664
        %v1667 = vmul.f32 %v1619, %v1665
        %v1668 = vmul.f32 %v1610, %v1664
        %v1669 = vmul.f32 %v1620, %v1665
        %v1670 = vmul.f32 %v1611, %v1664
        %v1671 = vmul.f32 %v1621, %v1665
        %v1672 = vmul.f32 %v1612, %v1664
        %v1673 = vmul.f32 %v1622, %v1665
        %v1674 = vmul.f32 %v1613, %v1664
        %v1675 = vmul.f32 %v1623, %v1665
        %v1676 = vmul.f32 %v1614, %v1664
        %v1677 = vmul.f32 %v1624, %v1665
        %v1678 = vmul.f32 %v1615, %v1664
        %v1679 = vmul.f32 %v1625, %v1665
        %v1680 = vmul.f32 %v1616, %v1664
        %v1681 = vmul.f32 %v1626, %v1665
        %v1682 = vadd.f32 %v1647, %v1666
        %v1683 = vadd.f32 %v1648, %v1667
        %v1684 = vadd.f32 %v1649, %v1668
        %v1685 = vadd.f32 %v1650, %v1669
        %v1686 = vadd.f32 %v1651, %v1670
        %v1687 = vadd.f32 %v1652, %v1671
        %v1688 = vadd.f32 %v1653, %v1672
        %v1689 = vadd.f32 %v1654, %v1673
        %v1690 = vadd.f32 %v1655, %v1674
        %v1691 = vadd.f32 %v1656, %v1675
        %v1692 = vadd.f32 %v1657, %v1676
        %v1693 = vadd.f32 %v1658, %v1677
        %v1694 = vadd.f32 %v1659, %v1678
        %v1695 = vadd.f32 %v1660, %v1679
        %v1696 = vadd.f32 %v1661, %v1680
        %v1697 = vadd.f32 %v1662, %v1681
        %s1698 = scalar_lea.vmem [#allocation8], 416
        %v1699 = vld [vmem:[%s1698] sm:$0xff]
        %v1700 = vld [vmem:[%s1698 + $0x8] sm:$0xff]
        %v1701 = vmul.f32 %v1610, %v1699
        %v1702 = vmul.f32 %v1620, %v1700
        %v1703 = vmul.f32 %v1611, %v1699
        %v1704 = vmul.f32 %v1621, %v1700
        %v1705 = vmul.f32 %v1612, %v1699
        %v1706 = vmul.f32 %v1622, %v1700
        %v1707 = vmul.f32 %v1613, %v1699
        %v1708 = vmul.f32 %v1623, %v1700
        %v1709 = vmul.f32 %v1614, %v1699
        %v1710 = vmul.f32 %v1624, %v1700
        %v1711 = vmul.f32 %v1615, %v1699
        %v1712 = vmul.f32 %v1625, %v1700
        %v1713 = vmul.f32 %v1616, %v1699
        %v1714 = vmul.f32 %v1626, %v1700
        %v1715 = vmul.f32 %v1617, %v1699
        %v1716 = vmul.f32 %v1627, %v1700
        %v1717 = vadd.f32 %v1682, %v1701
        %v1718 = vadd.f32 %v1683, %v1702
        %v1719 = vadd.f32 %v1684, %v1703
        %v1720 = vadd.f32 %v1685, %v1704
        %v1721 = vadd.f32 %v1686, %v1705
        %v1722 = vadd.f32 %v1687, %v1706
        %v1723 = vadd.f32 %v1688, %v1707
        %v1724 = vadd.f32 %v1689, %v1708
        %v1725 = vadd.f32 %v1690, %v1709
        %v1726 = vadd.f32 %v1691, %v1710
        %v1727 = vadd.f32 %v1692, %v1711
        %v1728 = vadd.f32 %v1693, %v1712
        %v1729 = vadd.f32 %v1694, %v1713
        %v1730 = vadd.f32 %v1695, %v1714
        %v1731 = vadd.f32 %v1696, %v1715
        %v1732 = vadd.f32 %v1697, %v1716
        %v1734 = vperm.slane %v432, 0
        %v1735 = vperm.slane %v432, 1
        %v1738 = vadd.f32 %v1734, %v859
        %v1739 = vadd.f32 %v1735, %v860
        %v1740 = vadd.f32 %v1734, %v861
        %v1741 = vadd.f32 %v1735, %v862
        %v1742 = vadd.f32 %v1734, %v863
        %v1743 = vadd.f32 %v1735, %v864
        %v1744 = vadd.f32 %v1734, %v865
        %v1745 = vadd.f32 %v1735, %v866
        %v1746 = vadd.f32 %v1734, %v867
        %v1747 = vadd.f32 %v1735, %v868
        %v1748 = vadd.f32 %v1734, %v869
        %v1749 = vadd.f32 %v1735, %v870
        %v1750 = vadd.f32 %v1734, %v871
        %v1751 = vadd.f32 %v1735, %v872
        %v1752 = vadd.f32 %v1734, %v873
        %v1753 = vadd.f32 %v1735, %v874
        %v1754 = vadd.f32 %v1738, %v1278
        %v1755 = vadd.f32 %v1739, %v1279
        %v1756 = vadd.f32 %v1740, %v1280
        %v1757 = vadd.f32 %v1741, %v1281
        %v1758 = vadd.f32 %v1742, %v1282
        %v1759 = vadd.f32 %v1743, %v1283
        %v1760 = vadd.f32 %v1744, %v1284
        %v1761 = vadd.f32 %v1745, %v1285
        %v1762 = vadd.f32 %v1746, %v1286
        %v1763 = vadd.f32 %v1747, %v1287
        %v1764 = vadd.f32 %v1748, %v1288
        %v1765 = vadd.f32 %v1749, %v1289
        %v1766 = vadd.f32 %v1750, %v1290
        %v1767 = vadd.f32 %v1751, %v1291
        %v1768 = vadd.f32 %v1752, %v1292
        %v1769 = vadd.f32 %v1753, %v1293
        %v1770 = vadd.f32 %v1754, %v1717
        %v1771 = vadd.f32 %v1755, %v1718
        %v1772 = vadd.f32 %v1756, %v1719
        %v1773 = vadd.f32 %v1757, %v1720
        %v1774 = vadd.f32 %v1758, %v1721
        %v1775 = vadd.f32 %v1759, %v1722
        %v1776 = vadd.f32 %v1760, %v1723
        %v1777 = vadd.f32 %v1761, %v1724
        %v1778 = vadd.f32 %v1762, %v1725
        %v1779 = vadd.f32 %v1763, %v1726
        %v1780 = vadd.f32 %v1764, %v1727
        %v1781 = vadd.f32 %v1765, %v1728
        %v1782 = vadd.f32 %v1766, %v1729
        %v1783 = vadd.f32 %v1767, %v1730
        %v1784 = vadd.f32 %v1768, %v1731
        %v1785 = vadd.f32 %v1769, %v1732
        %1786 = vst [vmem:[%s389] sm:$0xff] %v1770
        %1787 = vst [vmem:[%s389 + $0x8] sm:$0xff] %v1771
        %1788 = vst [vmem:[%s389 + $0x10] sm:$0xff] %v1772
        %1789 = vst [vmem:[%s389 + $0x18] sm:$0xff] %v1773
        %1790 = vst [vmem:[%s389 + $0x20] sm:$0xff] %v1774
        %1791 = vst [vmem:[%s389 + $0x28] sm:$0xff] %v1775
        %1792 = vst [vmem:[%s389 + $0x30] sm:$0xff] %v1776
        %1793 = vst [vmem:[%s389 + $0x38] sm:$0xff] %v1777
        %1794 = vst [vmem:[%s389 + $0x40] sm:$0xff] %v1778
        %1795 = vst [vmem:[%s389 + $0x48] sm:$0xff] %v1779
        %1796 = vst [vmem:[%s389 + $0x50] sm:$0xff] %v1780
        %1797 = vst [vmem:[%s389 + $0x58] sm:$0xff] %v1781
        %1798 = vst [vmem:[%s389 + $0x60] sm:$0xff] %v1782
        %1799 = vst [vmem:[%s389 + $0x68] sm:$0xff] %v1783
        %1800 = vst [vmem:[%s389 + $0x70] sm:$0xff] %v1784
        %1801 = vst [vmem:[%s389 + $0x78] sm:$0xff] %v1785
        %s1802 = sand.u32 %s190, 1
        %s1803 = scalar_lea.sflag [#allocation4], %s1802
        %s1804 = sand.u32 %s190, 1
        %s1805 = smul.addr %s1804, 128
        %s1806 = scalar_lea.vmem [#allocation10], %s1805
        // Predicated region
        $region57: #{tpu_custom_call.1} parent=39 // pred_check
          %p1807 = pneg %p200
        $region58: #{tpu_custom_call.1} parent=39 // pred_check_branch
          %1809 = sbr.rel (%p1807) target = $region60
        $region59: #{tpu_custom_call.1} parent=39 // pred_region
          %s1810 = smul.u32 8, %s31
          %1812 = vsyncadd %s1803, 0
          %s1813 = smul.addr %s1810, 2
          %s1814 = smul.addr %s30, 16
          %s1815 = sadd.s32 %s1813, %s1814
          %s1816 = smul.addr %s1815, 8
          %s1817 = scalar_lea.hbm %s5, %s1816
          %s1818 = sshll.u32 %s1806, 4
          %s1819 = int_to_ptr.vmem [resolvable:$true] %s1818
          %s1820 = sshll.u32 %s1817, 4
          %s1821 = int_to_ptr.hbm [resolvable:$true] %s1820
          %1826 = dma.vmem_to_hbm [thread:$0]  %s1819, 2048, %s1821, %s1803, 256, 256, 16
        $region60: #{tpu_custom_call.1} parent=39 // pred_fallthru
          _
      $region40: #{tpu_custom_call.1} parent=5 // pred_fallthru
        _
      %p1827 = scmp.le.s32.totalorder 2, %s21
      // Predicated region
      $region61: #{tpu_custom_call.1} parent=5 // pred_check
        %p1828 = pneg %p1827
      $region62: #{tpu_custom_call.1} parent=5 // pred_check_branch
        %1830 = sbr.rel (%p1828) target = $region64
      $region63: #{tpu_custom_call.1} parent=5 // pred_region
        %s1831 = ssub.s32 %s21, 2
        // Predicated region
        $region65: #{tpu_custom_call.1} parent=63 // pred_check
          %p1832 = pneg %p206
        $region66: #{tpu_custom_call.1} parent=63 // pred_check_branch
          %1834 = sbr.rel (%p1832) target = $region68
        $region67: #{tpu_custom_call.1} parent=63 // pred_region
          %s1835 = sand.u32 %s191, 1
          %s1836 = scalar_lea.sflag [#allocation4], %s1835
          %s1837 = sand.u32 %s191, 1
          %s1838 = smul.addr %s1837, 128
          %s1839 = scalar_lea.vmem [#allocation10], %s1838
          %1841 = dma.done %s1836, 2048
        $region68: #{tpu_custom_call.1} parent=63 // pred_fallthru
          _
      $region64: #{tpu_custom_call.1} parent=5 // pred_fallthru
        _
    $region6: #{tpu_custom_call.1} parent=1 // loop_footer
      %s25 = sadd.s32 1, %s21
    $region7: #{tpu_custom_call.1} parent=1 // loop_footer_branch
      %20 = sbr.rel target = $region3
    $region8: #{tpu_custom_call.1} parent=1 // loop_exit
      _
    %1842 = vsyncpa [#allocation3], 1
    %s1843 = scalar_lea.sflag [#allocation3], 1
    %1844 = vsyncpa %s1843, 1
    %1845 = vsyncpa [#allocation6], 1
    %s1846 = scalar_lea.sflag [#allocation6], 1
    %1847 = vsyncpa %s1846, 1
    %1848 = vsyncpa [#allocation9], 1
    %1849 = vsyncpa [#allocation4], 1
    %s1850 = scalar_lea.sflag [#allocation4], 1
    %1851 = vsyncpa %s1850, 1

</llo_original>
